<compile_context>
chip_gen: v7x
topology: tpu7x:2x2x1
jax: 0.10.0
libtpu: 0.0.40
codegen_flags: <defaults>
</compile_context>

<pallas_src>
import functools

import jax
import jax.numpy as jnp
from jax import lax
from jax.experimental import pallas as pl
from jax.experimental.pallas import tpu as pltpu

LEAKY_SLOPE = 0.01  # torch.nn.LeakyReLU default


def _round_up(x, m):
    return (x + m - 1) // m * m


def _pick_nb(n, cap=8):
    """Largest batch-per-step that divides N and keeps >= 2 grid steps."""
    nb = min(cap, n)
    if n >= 2:
        nb = min(nb, max(1, n // 2))
    while n % nb:
        nb -= 1
    return max(nb, 1)


def _decoder_kernel(masks_ref, u_ref, x1_ref, x2_ref, wup_ref, bup_ref,
                    w1s_ref, b1s_ref, w2_ref, b2_ref, o_ref,
                    xpad_ref, xt_ref,
                    *, NB, S, W, in_ch, out_ch, c2, off, spad):
    f32 = jnp.float32

    # Re-zero only the lane-aligned halo columns.  The interior [off, off+S)
    # is fully overwritten before every conv reads it.  Doing this every step
    # (tiny: a few vregs of stores) keeps the "parallel" grid axis safe on
    # multi-TensorCore chips, where a first-step-only init would never run on
    # the second core's private scratch.
    xpad_ref[:, 0:off] = jnp.zeros((NB * in_ch, off), f32)
    xpad_ref[:, off + S:spad] = jnp.zeros((NB * in_ch, spad - off - S), f32)

    mask_l = masks_ref[0:1, :]          # (1, S) — zero output column 0 taps
    mask_r = masks_ref[1:2, :]          # (1, S) — zero output column W-1 taps

    def stack_taps(cin):
        """Write the 9 shifted & pre-masked tap copies of the images currently
        held in the xpad interiors into xt rows [t*cin:(t+1)*cin], sample b in
        columns [b*S:(b+1)*S]."""
        for dy in range(3):
            for dx in range(3):
                t = dy * 3 + dx
                s = (dy - 1) * W + (dx - 1)
                slab = xpad_ref[:, off + s: off + s + S]      # (NB*in_ch, S)
                if dx == 0:
                    slab = slab * mask_l
                elif dx == 2:
                    slab = slab * mask_r
                for b in range(NB):
                    xt_ref[t * cin:(t + 1) * cin, b * S:(b + 1) * S] = (
                        slab[b * in_ch: b * in_ch + cin, :])

    def conv3x3(cin, w_ref, b_ref):
        """3x3 SAME conv as ONE (nout, 9*cin) x (9*cin, NB*S) MXU matmul."""
        stack_taps(cin)
        acc = lax.dot_general(w_ref[...], xt_ref[0:9 * cin, :],
                              (((1,), (0,)), ((), ())),
                              preferred_element_type=f32)
        return acc + b_ref[...]

    # ---- nearest-2x upsample of x1: one-hot gather matmul (U precomputed) ----
    for b in range(NB):
        xpad_ref[b * in_ch:(b + 1) * in_ch, off:off + S] = lax.dot_general(
            x1_ref[b], u_ref[...], (((1,), (0,)), ((), ())),
            preferred_element_type=f32)

    # ---- up_layer: conv3x3(in_ch -> out_ch), no activation ----
    up = conv3x3(in_ch, wup_ref, bup_ref)                     # (out_ch, NB*S)

    # ---- xc = concat([up, x2], channel), written into the xpad interiors ----
    for b in range(NB):
        xpad_ref[b * in_ch: b * in_ch + out_ch, off:off + S] = up[:, b * S:(b + 1) * S]
        xpad_ref[b * in_ch + out_ch:(b + 1) * in_ch, off:off + S] = x2_ref[b]

    # ---- conv1(in_ch->out_ch) with the 1x1 shortcut folded in as extra rows ----
    y1s = conv3x3(in_ch, w1s_ref, b1s_ref)                    # (2*out_ch, NB*S)
    shortcut = y1s[out_ch:, :]
    y = y1s[:out_ch, :]
    y = jnp.maximum(y, LEAKY_SLOPE * y)

    # ---- conv2(out_ch->out_ch) + LeakyReLU ----
    for b in range(NB):
        xpad_ref[b * in_ch: b * in_ch + out_ch, off:off + S] = y[:, b * S:(b + 1) * S]
    y = conv3x3(out_ch, w2_ref, b2_ref)
    y = jnp.maximum(y, LEAKY_SLOPE * y)

    # ---- residual add, single lane-dense store ----
    o_ref[...] = (y + shortcut).astype(o_ref.dtype)


def decoder_layer_forward(x1, x2, params, *, nb_max=8):
    """x1: (N, in_ch, H/2, W/2), x2: (N, in_ch-out_ch, H, W) -> (N, out_ch, H, W)."""
    N, in_ch, H1, W1 = x1.shape
    _, c2, H, W = x2.shape
    out_ch = params["w_up"].shape[2]
    assert (H, W) == (2 * H1, 2 * W1) and c2 == in_ch - out_ch

    S1, S = H1 * W1, H * W
    # Padded flat scratch: interior starts at a 128-aligned offset `off`,
    # with a zero halo of >= W+1 entries on each side.
    off = _round_up(W + 1, 128)
    spad = _round_up(off + S + W + 1, 128)
    NB = _pick_nb(N, nb_max)

    f32 = jnp.float32

    # ---- shape-static constants, built once in the wrapper ----
    k = jnp.arange(S, dtype=jnp.int32)
    col = k % W
    row = k // W
    masks = jnp.stack([(col >= 1).astype(f32),
                       (col <= W - 2).astype(f32)], axis=0)          # (2, S)
    src = (row // 2) * W1 + (col // 2)
    U = (jnp.arange(S1, dtype=jnp.int32)[:, None] == src[None, :]).astype(f32)

    # ---- weight packing: (3,3,out,cin) -> (out, 9*cin), tap-major rows ----
    def pack3x3(w):
        return jnp.transpose(w, (2, 0, 1, 3)).reshape(w.shape[2], -1)

    w_up = pack3x3(params["w_up"])                                   # (out_ch, 9*in_ch)
    w1p = pack3x3(params["w1"])
    # Fold the 1x1 shortcut into conv1: extra out_ch output rows, nonzero only
    # on the centre-tap (t=4) block, so one matmul yields [conv1 ; shortcut].
    ws_rows = jnp.zeros((out_ch, 9 * in_ch), f32)
    ws_rows = ws_rows.at[:, 4 * in_ch:5 * in_ch].set(params["ws"])
    w1s = jnp.concatenate([w1p, ws_rows], axis=0)                    # (2*out_ch, 9*in_ch)
    b1s = jnp.concatenate([params["b1"], params["bs"]], axis=0)      # (2*out_ch, 1)
    w2p = pack3x3(params["w2"])                                      # (out_ch, 9*out_ch)

    kernel = functools.partial(_decoder_kernel, NB=NB, S=S, W=W, in_ch=in_ch,
                               out_ch=out_ch, c2=c2, off=off, spad=spad)

    out = pl.pallas_call(
        kernel,
        out_shape=jax.ShapeDtypeStruct((out_ch, N * S), f32),
        grid=(N // NB,),
        in_specs=[
            pl.BlockSpec((2, S), lambda g: (0, 0)),                   # masks
            pl.BlockSpec((S1, S), lambda g: (0, 0)),                  # upsample U
            pl.BlockSpec((NB, in_ch, S1), lambda g: (g, 0, 0)),       # x1
            pl.BlockSpec((NB, c2, S), lambda g: (g, 0, 0)),           # x2
            pl.BlockSpec((out_ch, 9 * in_ch), lambda g: (0, 0)),      # w_up packed
            pl.BlockSpec((out_ch, 1), lambda g: (0, 0)),              # b_up
            pl.BlockSpec((2 * out_ch, 9 * in_ch), lambda g: (0, 0)),  # w1 + shortcut
            pl.BlockSpec((2 * out_ch, 1), lambda g: (0, 0)),          # b1 + bs
            pl.BlockSpec((out_ch, 9 * out_ch), lambda g: (0, 0)),     # w2 packed
            pl.BlockSpec((out_ch, 1), lambda g: (0, 0)),              # b2
        ],
        out_specs=pl.BlockSpec((out_ch, NB * S), lambda g: (0, g)),
        scratch_shapes=[pltpu.VMEM((NB * in_ch, spad), f32),          # padded images
                        pltpu.VMEM((9 * in_ch, NB * S), f32)],        # stacked taps
        compiler_params=pltpu.CompilerParams(
            dimension_semantics=("parallel",)),
    )(masks, U, x1.reshape(N, in_ch, S1), x2.reshape(N, c2, S),
      w_up, params["b_up"], w1s, b1s, w2p, params["b2"])

    # (out_ch, N*S) -> (N, out_ch, H, W): tiny wrapper-side layout fixup that
    # lets the kernel emit a single lane-dense output slab.
    return out.reshape(out_ch, N, H, W).transpose(1, 0, 2, 3)


# -------------------- pure-JAX reference for validation --------------------
def _conv3x3_ref(x, w, b):
    # x: NCHW, w: (3, 3, out_ch, in_ch), b: (out_ch, 1)
    w_oihw = jnp.transpose(w, (2, 3, 0, 1))
    y = lax.conv_general_dilated(x, w_oihw, (1, 1), "SAME",
                                 dimension_numbers=("NCHW", "OIHW", "NCHW"))
    return y + b.reshape(1, -1, 1, 1)


def decoder_layer_ref(x1, x2, p):
    x1_up = jnp.repeat(jnp.repeat(x1, 2, axis=2), 2, axis=3)
    up = _conv3x3_ref(x1_up, p["w_up"], p["b_up"])
    xc = jnp.concatenate([up, x2], axis=1)
    y = _conv3x3_ref(xc, p["w1"], p["b1"])
    y = jnp.maximum(y, LEAKY_SLOPE * y)
    y = _conv3x3_ref(y, p["w2"], p["b2"])
    y = jnp.maximum(y, LEAKY_SLOPE * y)
    sc = jnp.einsum("oc,nchw->nohw", p["ws"], xc) + p["bs"].reshape(1, -1, 1, 1)
    return y + sc


if __name__ == "__main__":
    in_ch, out_ch = 8, 4          # in_ch != out_ch -> shortcut is a 1x1 conv
    N, H1, W1 = 2, 8, 8           # x1 spatial; x2 / output spatial is (16, 16)

    key = jax.random.PRNGKey(0)
    ks = jax.random.split(key, 10)

    params = {
        "w_up": 0.1 * jax.random.normal(ks[0], (3, 3, out_ch, in_ch), jnp.float32),
        "b_up": 0.1 * jax.random.normal(ks[1], (out_ch, 1), jnp.float32),
        "w1":   0.1 * jax.random.normal(ks[2], (3, 3, out_ch, in_ch), jnp.float32),
        "b1":   0.1 * jax.random.normal(ks[3], (out_ch, 1), jnp.float32),
        "w2":   0.1 * jax.random.normal(ks[4], (3, 3, out_ch, out_ch), jnp.float32),
        "b2":   0.1 * jax.random.normal(ks[5], (out_ch, 1), jnp.float32),
        "ws":   0.1 * jax.random.normal(ks[6], (out_ch, in_ch), jnp.float32),
        "bs":   0.1 * jax.random.normal(ks[7], (out_ch, 1), jnp.float32),
    }

    x1 = jax.random.normal(ks[8], (N, in_ch, H1, W1), jnp.float32)
    x2 = jax.random.normal(ks[9], (N, in_ch - out_ch, 2 * H1, 2 * W1), jnp.float32)

    out = jax.block_until_ready(jax.jit(decoder_layer_forward)(x1, x2, params))
    ref = jax.block_until_ready(decoder_layer_ref(x1, x2, params))

    assert out.shape == (N, out_ch, 2 * H1, 2 * W1), out.shape
    max_err = float(jnp.max(jnp.abs(out - ref)))
    assert jnp.allclose(out, ref, atol=1e-4, rtol=1e-4), max_err
    print("KERNEL_OK")
</pallas_src>

<mosaic_0001>
module attributes {stable_mosaic.version = 11 : i64} {
  func.func @_decoder_kernel(%arg0: i32, %arg1: memref<2x256xf32, #tpu.memory_space<vmem>>, %arg2: memref<64x256xf32, #tpu.memory_space<vmem>>, %arg3: memref<1x8x64xf32, #tpu.memory_space<vmem>>, %arg4: memref<1x4x256xf32, #tpu.memory_space<vmem>>, %arg5: memref<4x72xf32, #tpu.memory_space<vmem>>, %arg6: memref<4x1xf32, #tpu.memory_space<vmem>>, %arg7: memref<8x72xf32, #tpu.memory_space<vmem>>, %arg8: memref<8x1xf32, #tpu.memory_space<vmem>>, %arg9: memref<4x36xf32, #tpu.memory_space<vmem>>, %arg10: memref<4x1xf32, #tpu.memory_space<vmem>>, %arg11: memref<4x256xf32, #tpu.memory_space<vmem>>, %arg12: memref<8x512xf32, #tpu.memory_space<vmem>>, %arg13: memref<72x256xf32, #tpu.memory_space<vmem>>) attributes {dimension_semantics = [#tpu.dimension_semantics<parallel>], iteration_bounds = array<i64: 2>, scalar_prefetch = 0 : i64, scratch_operands = 2 : i64, tpu.core_type = #tpu.core_type<tc>, window_params = [{pipeline_mode = #tpu.pipeline_mode<synchronous>, transform_indices = @transform_0, window_bounds = array<i64: 2, 256>}, {pipeline_mode = #tpu.pipeline_mode<synchronous>, transform_indices = @transform_1, window_bounds = array<i64: 64, 256>}, {transform_indices = @transform_2, window_bounds = array<i64: 1, 8, 64>}, {transform_indices = @transform_3, window_bounds = array<i64: 1, 4, 256>}, {pipeline_mode = #tpu.pipeline_mode<synchronous>, transform_indices = @transform_4, window_bounds = array<i64: 4, 72>}, {pipeline_mode = #tpu.pipeline_mode<synchronous>, transform_indices = @transform_5, window_bounds = array<i64: 4, 1>}, {pipeline_mode = #tpu.pipeline_mode<synchronous>, transform_indices = @transform_6, window_bounds = array<i64: 8, 72>}, {pipeline_mode = #tpu.pipeline_mode<synchronous>, transform_indices = @transform_7, window_bounds = array<i64: 8, 1>}, {pipeline_mode = #tpu.pipeline_mode<synchronous>, transform_indices = @transform_8, window_bounds = array<i64: 4, 36>}, {pipeline_mode = #tpu.pipeline_mode<synchronous>, transform_indices = @transform_9, window_bounds = array<i64: 4, 1>}, {transform_indices = @transform_10, window_bounds = array<i64: 4, 256>}]} {
    %cst = arith.constant 0.000000e+00 : f32
    %0 = vector.broadcast %cst : f32 to vector<8x128xf32>
    %c0 = arith.constant 0 : index
    %c0_0 = arith.constant 0 : index
    %1 = vector.load %arg12[%c0, %c0_0] : memref<8x512xf32, #tpu.memory_space<vmem>>, vector<8x128xf32>
    tpu.vector_store %arg12[%c0, %c0_0], %0 {strides = array<i32>} : memref<8x512xf32, #tpu.memory_space<vmem>>, vector<8x128xf32>,
    %cst_1 = arith.constant 0.000000e+00 : f32
    %2 = vector.broadcast %cst_1 : f32 to vector<8x128xf32>
    %c0_2 = arith.constant 0 : index
    %c384 = arith.constant 384 : index
    %3 = vector.load %arg12[%c0_2, %c384] : memref<8x512xf32, #tpu.memory_space<vmem>>, vector<8x128xf32>
    tpu.vector_store %arg12[%c0_2, %c384], %2 {strides = array<i32>} : memref<8x512xf32, #tpu.memory_space<vmem>>, vector<8x128xf32>,
    %c0_3 = arith.constant 0 : index
    %c0_4 = arith.constant 0 : index
    %4 = vector.load %arg1[%c0_3, %c0_4] : memref<2x256xf32, #tpu.memory_space<vmem>>, vector<1x256xf32>
    %c1 = arith.constant 1 : index
    %c0_5 = arith.constant 0 : index
    %5 = vector.load %arg1[%c1, %c0_5] : memref<2x256xf32, #tpu.memory_space<vmem>>, vector<1x256xf32>
    %c0_6 = arith.constant 0 : index
    %c0_7 = arith.constant 0 : index
    %c0_8 = arith.constant 0 : index
    %6 = vector.load %arg3[%c0_6, %c0_7, %c0_8] : memref<1x8x64xf32, #tpu.memory_space<vmem>>, vector<1x8x64xf32>
    %7 = vector.shape_cast %6 : vector<1x8x64xf32> to vector<8x64xf32>
    %c0_9 = arith.constant 0 : index
    %c0_10 = arith.constant 0 : index
    %8 = vector.load %arg2[%c0_9, %c0_10] : memref<64x256xf32, #tpu.memory_space<vmem>>, vector<64x256xf32>
    %cst_11 = arith.constant dense<0.000000e+00> : vector<8x256xf32>
    %9 = tpu.matmul %7, %8, %cst_11 {dimension_numbers = #tpu.dot_dimension_numbers<[1], [0], [0], [1], [0, 0, 1, 1], [], []>} : vector<8x64xf32>, vector<64x256xf32>, vector<8x256xf32> -> vector<8x256xf32>
    %c0_12 = arith.constant 0 : index
    %c128 = arith.constant 128 : index
    %10 = vector.load %arg12[%c0_12, %c128] : memref<8x512xf32, #tpu.memory_space<vmem>>, vector<8x256xf32>
    tpu.vector_store %arg12[%c0_12, %c128], %9 {strides = array<i32>} : memref<8x512xf32, #tpu.memory_space<vmem>>, vector<8x256xf32>,
    %c0_13 = arith.constant 0 : index
    %c111 = arith.constant 111 : index
    %11 = vector.load %arg12[%c0_13, %c111] : memref<8x512xf32, #tpu.memory_space<vmem>>, vector<8x256xf32>
    %12 = vector.broadcast %4 : vector<1x256xf32> to vector<8x256xf32>
    %13 = arith.mulf %11, %12 : vector<8x256xf32>
    %c0_14 = arith.constant 0 : index
    %c0_15 = arith.constant 0 : index
    %14 = vector.load %arg13[%c0_14, %c0_15] : memref<72x256xf32, #tpu.memory_space<vmem>>, vector<8x256xf32>
    tpu.vector_store %arg13[%c0_14, %c0_15], %13 {strides = array<i32>} : memref<72x256xf32, #tpu.memory_space<vmem>>, vector<8x256xf32>,
    %c0_16 = arith.constant 0 : index
    %c112 = arith.constant 112 : index
    %15 = vector.load %arg12[%c0_16, %c112] : memref<8x512xf32, #tpu.memory_space<vmem>>, vector<8x256xf32>
    %c8 = arith.constant 8 : index
    %c0_17 = arith.constant 0 : index
    %16 = vector.load %arg13[%c8, %c0_17] : memref<72x256xf32, #tpu.memory_space<vmem>>, vector<8x256xf32>
    tpu.vector_store %arg13[%c8, %c0_17], %15 {strides = array<i32>} : memref<72x256xf32, #tpu.memory_space<vmem>>, vector<8x256xf32>,
    %c0_18 = arith.constant 0 : index
    %c113 = arith.constant 113 : index
    %17 = vector.load %arg12[%c0_18, %c113] : memref<8x512xf32, #tpu.memory_space<vmem>>, vector<8x256xf32>
    %18 = vector.broadcast %5 : vector<1x256xf32> to vector<8x256xf32>
    %19 = arith.mulf %17, %18 : vector<8x256xf32>
    %c16 = arith.constant 16 : index
    %c0_19 = arith.constant 0 : index
    %20 = vector.load %arg13[%c16, %c0_19] : memref<72x256xf32, #tpu.memory_space<vmem>>, vector<8x256xf32>
    tpu.vector_store %arg13[%c16, %c0_19], %19 {strides = array<i32>} : memref<72x256xf32, #tpu.memory_space<vmem>>, vector<8x256xf32>,
    %c0_20 = arith.constant 0 : index
    %c127 = arith.constant 127 : index
    %21 = vector.load %arg12[%c0_20, %c127] : memref<8x512xf32, #tpu.memory_space<vmem>>, vector<8x256xf32>
    %22 = vector.broadcast %4 : vector<1x256xf32> to vector<8x256xf32>
    %23 = arith.mulf %21, %22 : vector<8x256xf32>
    %c24 = arith.constant 24 : index
    %c0_21 = arith.constant 0 : index
    %24 = vector.load %arg13[%c24, %c0_21] : memref<72x256xf32, #tpu.memory_space<vmem>>, vector<8x256xf32>
    tpu.vector_store %arg13[%c24, %c0_21], %23 {strides = array<i32>} : memref<72x256xf32, #tpu.memory_space<vmem>>, vector<8x256xf32>,
    %c0_22 = arith.constant 0 : index
    %c128_23 = arith.constant 128 : index
    %25 = vector.load %arg12[%c0_22, %c128_23] : memref<8x512xf32, #tpu.memory_space<vmem>>, vector<8x256xf32>
    %c32 = arith.constant 32 : index
    %c0_24 = arith.constant 0 : index
    %26 = vector.load %arg13[%c32, %c0_24] : memref<72x256xf32, #tpu.memory_space<vmem>>, vector<8x256xf32>
    tpu.vector_store %arg13[%c32, %c0_24], %25 {strides = array<i32>} : memref<72x256xf32, #tpu.memory_space<vmem>>, vector<8x256xf32>,
    %c0_25 = arith.constant 0 : index
    %c129 = arith.constant 129 : index
    %27 = vector.load %arg12[%c0_25, %c129] : memref<8x512xf32, #tpu.memory_space<vmem>>, vector<8x256xf32>
    %28 = vector.broadcast %5 : vector<1x256xf32> to vector<8x256xf32>
    %29 = arith.mulf %27, %28 : vector<8x256xf32>
    %c40 = arith.constant 40 : index
    %c0_26 = arith.constant 0 : index
    %30 = vector.load %arg13[%c40, %c0_26] : memref<72x256xf32, #tpu.memory_space<vmem>>, vector<8x256xf32>
    tpu.vector_store %arg13[%c40, %c0_26], %29 {strides = array<i32>} : memref<72x256xf32, #tpu.memory_space<vmem>>, vector<8x256xf32>,
    %c0_27 = arith.constant 0 : index
    %c143 = arith.constant 143 : index
    %31 = vector.load %arg12[%c0_27, %c143] : memref<8x512xf32, #tpu.memory_space<vmem>>, vector<8x256xf32>
    %32 = vector.broadcast %4 : vector<1x256xf32> to vector<8x256xf32>
    %33 = arith.mulf %31, %32 : vector<8x256xf32>
    %c48 = arith.constant 48 : index
    %c0_28 = arith.constant 0 : index
    %34 = vector.load %arg13[%c48, %c0_28] : memref<72x256xf32, #tpu.memory_space<vmem>>, vector<8x256xf32>
    tpu.vector_store %arg13[%c48, %c0_28], %33 {strides = array<i32>} : memref<72x256xf32, #tpu.memory_space<vmem>>, vector<8x256xf32>,
    %c0_29 = arith.constant 0 : index
    %c144 = arith.constant 144 : index
    %35 = vector.load %arg12[%c0_29, %c144] : memref<8x512xf32, #tpu.memory_space<vmem>>, vector<8x256xf32>
    %c56 = arith.constant 56 : index
    %c0_30 = arith.constant 0 : index
    %36 = vector.load %arg13[%c56, %c0_30] : memref<72x256xf32, #tpu.memory_space<vmem>>, vector<8x256xf32>
    tpu.vector_store %arg13[%c56, %c0_30], %35 {strides = array<i32>} : memref<72x256xf32, #tpu.memory_space<vmem>>, vector<8x256xf32>,
    %c0_31 = arith.constant 0 : index
    %c145 = arith.constant 145 : index
    %37 = vector.load %arg12[%c0_31, %c145] : memref<8x512xf32, #tpu.memory_space<vmem>>, vector<8x256xf32>
    %38 = vector.broadcast %5 : vector<1x256xf32> to vector<8x256xf32>
    %39 = arith.mulf %37, %38 : vector<8x256xf32>
    %c64 = arith.constant 64 : index
    %c0_32 = arith.constant 0 : index
    %40 = vector.load %arg13[%c64, %c0_32] : memref<72x256xf32, #tpu.memory_space<vmem>>, vector<8x256xf32>
    tpu.vector_store %arg13[%c64, %c0_32], %39 {strides = array<i32>} : memref<72x256xf32, #tpu.memory_space<vmem>>, vector<8x256xf32>,
    %c0_33 = arith.constant 0 : index
    %c0_34 = arith.constant 0 : index
    %41 = vector.load %arg5[%c0_33, %c0_34] : memref<4x72xf32, #tpu.memory_space<vmem>>, vector<4x72xf32>
    %c0_35 = arith.constant 0 : index
    %c0_36 = arith.constant 0 : index
    %42 = vector.load %arg13[%c0_35, %c0_36] : memref<72x256xf32, #tpu.memory_space<vmem>>, vector<72x256xf32>
    %cst_37 = arith.constant dense<0.000000e+00> : vector<4x256xf32>
    %43 = tpu.matmul %41, %42, %cst_37 {dimension_numbers = #tpu.dot_dimension_numbers<[1], [0], [0], [1], [0, 0, 1, 1], [], []>} : vector<4x72xf32>, vector<72x256xf32>, vector<4x256xf32> -> vector<4x256xf32>
    %c0_38 = arith.constant 0 : index
    %c0_39 = arith.constant 0 : index
    %44 = vector.load %arg6[%c0_38, %c0_39] : memref<4x1xf32, #tpu.memory_space<vmem>>, vector<4x1xf32>
    %45 = vector.broadcast %44 : vector<4x1xf32> to vector<4x256xf32>
    %46 = arith.addf %43, %45 : vector<4x256xf32>
    %c0_40 = arith.constant 0 : index
    %c128_41 = arith.constant 128 : index
    %47 = vector.load %arg12[%c0_40, %c128_41] : memref<8x512xf32, #tpu.memory_space<vmem>>, vector<4x256xf32>
    tpu.vector_store %arg12[%c0_40, %c128_41], %46 {strides = array<i32>} : memref<8x512xf32, #tpu.memory_space<vmem>>, vector<4x256xf32>,
    %c0_42 = arith.constant 0 : index
    %c0_43 = arith.constant 0 : index
    %c0_44 = arith.constant 0 : index
    %48 = vector.load %arg4[%c0_42, %c0_43, %c0_44] : memref<1x4x256xf32, #tpu.memory_space<vmem>>, vector<1x4x256xf32>
    %49 = vector.shape_cast %48 : vector<1x4x256xf32> to vector<4x256xf32>
    %c4 = arith.constant 4 : index
    %c128_45 = arith.constant 128 : index
    %50 = vector.load %arg12[%c4, %c128_45] : memref<8x512xf32, #tpu.memory_space<vmem>>, vector<4x256xf32>
    tpu.vector_store %arg12[%c4, %c128_45], %49 {strides = array<i32>} : memref<8x512xf32, #tpu.memory_space<vmem>>, vector<4x256xf32>,
    %c0_46 = arith.constant 0 : index
    %c111_47 = arith.constant 111 : index
    %51 = vector.load %arg12[%c0_46, %c111_47] : memref<8x512xf32, #tpu.memory_space<vmem>>, vector<8x256xf32>
    %52 = vector.broadcast %4 : vector<1x256xf32> to vector<8x256xf32>
    %53 = arith.mulf %51, %52 : vector<8x256xf32>
    %c0_48 = arith.constant 0 : index
    %c0_49 = arith.constant 0 : index
    %54 = vector.load %arg13[%c0_48, %c0_49] : memref<72x256xf32, #tpu.memory_space<vmem>>, vector<8x256xf32>
    tpu.vector_store %arg13[%c0_48, %c0_49], %53 {strides = array<i32>} : memref<72x256xf32, #tpu.memory_space<vmem>>, vector<8x256xf32>,
    %c0_50 = arith.constant 0 : index
    %c112_51 = arith.constant 112 : index
    %55 = vector.load %arg12[%c0_50, %c112_51] : memref<8x512xf32, #tpu.memory_space<vmem>>, vector<8x256xf32>
    %c8_52 = arith.constant 8 : index
    %c0_53 = arith.constant 0 : index
    %56 = vector.load %arg13[%c8_52, %c0_53] : memref<72x256xf32, #tpu.memory_space<vmem>>, vector<8x256xf32>
    tpu.vector_store %arg13[%c8_52, %c0_53], %55 {strides = array<i32>} : memref<72x256xf32, #tpu.memory_space<vmem>>, vector<8x256xf32>,
    %c0_54 = arith.constant 0 : index
    %c113_55 = arith.constant 113 : index
    %57 = vector.load %arg12[%c0_54, %c113_55] : memref<8x512xf32, #tpu.memory_space<vmem>>, vector<8x256xf32>
    %58 = vector.broadcast %5 : vector<1x256xf32> to vector<8x256xf32>
    %59 = arith.mulf %57, %58 : vector<8x256xf32>
    %c16_56 = arith.constant 16 : index
    %c0_57 = arith.constant 0 : index
    %60 = vector.load %arg13[%c16_56, %c0_57] : memref<72x256xf32, #tpu.memory_space<vmem>>, vector<8x256xf32>
    tpu.vector_store %arg13[%c16_56, %c0_57], %59 {strides = array<i32>} : memref<72x256xf32, #tpu.memory_space<vmem>>, vector<8x256xf32>,
    %c0_58 = arith.constant 0 : index
    %c127_59 = arith.constant 127 : index
    %61 = vector.load %arg12[%c0_58, %c127_59] : memref<8x512xf32, #tpu.memory_space<vmem>>, vector<8x256xf32>
    %62 = vector.broadcast %4 : vector<1x256xf32> to vector<8x256xf32>
    %63 = arith.mulf %61, %62 : vector<8x256xf32>
    %c24_60 = arith.constant 24 : index
    %c0_61 = arith.constant 0 : index
    %64 = vector.load %arg13[%c24_60, %c0_61] : memref<72x256xf32, #tpu.memory_space<vmem>>, vector<8x256xf32>
    tpu.vector_store %arg13[%c24_60, %c0_61], %63 {strides = array<i32>} : memref<72x256xf32, #tpu.memory_space<vmem>>, vector<8x256xf32>,
    %c0_62 = arith.constant 0 : index
    %c128_63 = arith.constant 128 : index
    %65 = vector.load %arg12[%c0_62, %c128_63] : memref<8x512xf32, #tpu.memory_space<vmem>>, vector<8x256xf32>
    %c32_64 = arith.constant 32 : index
    %c0_65 = arith.constant 0 : index
    %66 = vector.load %arg13[%c32_64, %c0_65] : memref<72x256xf32, #tpu.memory_space<vmem>>, vector<8x256xf32>
    tpu.vector_store %arg13[%c32_64, %c0_65], %65 {strides = array<i32>} : memref<72x256xf32, #tpu.memory_space<vmem>>, vector<8x256xf32>,
    %c0_66 = arith.constant 0 : index
    %c129_67 = arith.constant 129 : index
    %67 = vector.load %arg12[%c0_66, %c129_67] : memref<8x512xf32, #tpu.memory_space<vmem>>, vector<8x256xf32>
    %68 = vector.broadcast %5 : vector<1x256xf32> to vector<8x256xf32>
    %69 = arith.mulf %67, %68 : vector<8x256xf32>
    %c40_68 = arith.constant 40 : index
    %c0_69 = arith.constant 0 : index
    %70 = vector.load %arg13[%c40_68, %c0_69] : memref<72x256xf32, #tpu.memory_space<vmem>>, vector<8x256xf32>
    tpu.vector_store %arg13[%c40_68, %c0_69], %69 {strides = array<i32>} : memref<72x256xf32, #tpu.memory_space<vmem>>, vector<8x256xf32>,
    %c0_70 = arith.constant 0 : index
    %c143_71 = arith.constant 143 : index
    %71 = vector.load %arg12[%c0_70, %c143_71] : memref<8x512xf32, #tpu.memory_space<vmem>>, vector<8x256xf32>
    %72 = vector.broadcast %4 : vector<1x256xf32> to vector<8x256xf32>
    %73 = arith.mulf %71, %72 : vector<8x256xf32>
    %c48_72 = arith.constant 48 : index
    %c0_73 = arith.constant 0 : index
    %74 = vector.load %arg13[%c48_72, %c0_73] : memref<72x256xf32, #tpu.memory_space<vmem>>, vector<8x256xf32>
    tpu.vector_store %arg13[%c48_72, %c0_73], %73 {strides = array<i32>} : memref<72x256xf32, #tpu.memory_space<vmem>>, vector<8x256xf32>,
    %c0_74 = arith.constant 0 : index
    %c144_75 = arith.constant 144 : index
    %75 = vector.load %arg12[%c0_74, %c144_75] : memref<8x512xf32, #tpu.memory_space<vmem>>, vector<8x256xf32>
    %c56_76 = arith.constant 56 : index
    %c0_77 = arith.constant 0 : index
    %76 = vector.load %arg13[%c56_76, %c0_77] : memref<72x256xf32, #tpu.memory_space<vmem>>, vector<8x256xf32>
    tpu.vector_store %arg13[%c56_76, %c0_77], %75 {strides = array<i32>} : memref<72x256xf32, #tpu.memory_space<vmem>>, vector<8x256xf32>,
    %c0_78 = arith.constant 0 : index
    %c145_79 = arith.constant 145 : index
    %77 = vector.load %arg12[%c0_78, %c145_79] : memref<8x512xf32, #tpu.memory_space<vmem>>, vector<8x256xf32>
    %78 = vector.broadcast %5 : vector<1x256xf32> to vector<8x256xf32>
    %79 = arith.mulf %77, %78 : vector<8x256xf32>
    %c64_80 = arith.constant 64 : index
    %c0_81 = arith.constant 0 : index
    %80 = vector.load %arg13[%c64_80, %c0_81] : memref<72x256xf32, #tpu.memory_space<vmem>>, vector<8x256xf32>
    tpu.vector_store %arg13[%c64_80, %c0_81], %79 {strides = array<i32>} : memref<72x256xf32, #tpu.memory_space<vmem>>, vector<8x256xf32>,
    %c0_82 = arith.constant 0 : index
    %c0_83 = arith.constant 0 : index
    %81 = vector.load %arg7[%c0_82, %c0_83] : memref<8x72xf32, #tpu.memory_space<vmem>>, vector<8x72xf32>
    %c0_84 = arith.constant 0 : index
    %c0_85 = arith.constant 0 : index
    %82 = vector.load %arg13[%c0_84, %c0_85] : memref<72x256xf32, #tpu.memory_space<vmem>>, vector<72x256xf32>
    %cst_86 = arith.constant dense<0.000000e+00> : vector<8x256xf32>
    %83 = tpu.matmul %81, %82, %cst_86 {dimension_numbers = #tpu.dot_dimension_numbers<[1], [0], [0], [1], [0, 0, 1, 1], [], []>} : vector<8x72xf32>, vector<72x256xf32>, vector<8x256xf32> -> vector<8x256xf32>
    %c0_87 = arith.constant 0 : index
    %c0_88 = arith.constant 0 : index
    %84 = vector.load %arg8[%c0_87, %c0_88] : memref<8x1xf32, #tpu.memory_space<vmem>>, vector<8x1xf32>
    %85 = vector.broadcast %84 : vector<8x1xf32> to vector<8x256xf32>
    %86 = arith.addf %83, %85 : vector<8x256xf32>
    %87 = vector.extract_strided_slice %86 {offsets = [4, 0], sizes = [4, 256], strides = [1, 1]} : vector<8x256xf32> to vector<4x256xf32>
    %88 = vector.extract_strided_slice %86 {offsets = [0, 0], sizes = [4, 256], strides = [1, 1]} : vector<8x256xf32> to vector<4x256xf32>
    %cst_89 = arith.constant 0.00999999977 : f32
    %89 = vector.broadcast %cst_89 : f32 to vector<4x256xf32>
    %90 = arith.mulf %89, %88 : vector<4x256xf32>
    %91 = arith.maximumf %88, %90 : vector<4x256xf32>
    %c0_90 = arith.constant 0 : index
    %c128_91 = arith.constant 128 : index
    %92 = vector.load %arg12[%c0_90, %c128_91] : memref<8x512xf32, #tpu.memory_space<vmem>>, vector<4x256xf32>
    tpu.vector_store %arg12[%c0_90, %c128_91], %91 {strides = array<i32>} : memref<8x512xf32, #tpu.memory_space<vmem>>, vector<4x256xf32>,
    %c0_92 = arith.constant 0 : index
    %c111_93 = arith.constant 111 : index
    %93 = vector.load %arg12[%c0_92, %c111_93] : memref<8x512xf32, #tpu.memory_space<vmem>>, vector<8x256xf32>
    %94 = vector.broadcast %4 : vector<1x256xf32> to vector<8x256xf32>
    %95 = arith.mulf %93, %94 : vector<8x256xf32>
    %96 = vector.extract_strided_slice %95 {offsets = [0, 0], sizes = [4, 256], strides = [1, 1]} : vector<8x256xf32> to vector<4x256xf32>
    %c0_94 = arith.constant 0 : index
    %c0_95 = arith.constant 0 : index
    %97 = vector.load %arg13[%c0_94, %c0_95] : memref<72x256xf32, #tpu.memory_space<vmem>>, vector<4x256xf32>
    tpu.vector_store %arg13[%c0_94, %c0_95], %96 {strides = array<i32>} : memref<72x256xf32, #tpu.memory_space<vmem>>, vector<4x256xf32>,
    %c0_96 = arith.constant 0 : index
    %c112_97 = arith.constant 112 : index
    %98 = vector.load %arg12[%c0_96, %c112_97] : memref<8x512xf32, #tpu.memory_space<vmem>>, vector<8x256xf32>
    %99 = vector.extract_strided_slice %98 {offsets = [0, 0], sizes = [4, 256], strides = [1, 1]} : vector<8x256xf32> to vector<4x256xf32>
    %c4_98 = arith.constant 4 : index
    %c0_99 = arith.constant 0 : index
    %100 = vector.load %arg13[%c4_98, %c0_99] : memref<72x256xf32, #tpu.memory_space<vmem>>, vector<4x256xf32>
    tpu.vector_store %arg13[%c4_98, %c0_99], %99 {strides = array<i32>} : memref<72x256xf32, #tpu.memory_space<vmem>>, vector<4x256xf32>,
    %c0_100 = arith.constant 0 : index
    %c113_101 = arith.constant 113 : index
    %101 = vector.load %arg12[%c0_100, %c113_101] : memref<8x512xf32, #tpu.memory_space<vmem>>, vector<8x256xf32>
    %102 = vector.broadcast %5 : vector<1x256xf32> to vector<8x256xf32>
    %103 = arith.mulf %101, %102 : vector<8x256xf32>
    %104 = vector.extract_strided_slice %103 {offsets = [0, 0], sizes = [4, 256], strides = [1, 1]} : vector<8x256xf32> to vector<4x256xf32>
    %c8_102 = arith.constant 8 : index
    %c0_103 = arith.constant 0 : index
    %105 = vector.load %arg13[%c8_102, %c0_103] : memref<72x256xf32, #tpu.memory_space<vmem>>, vector<4x256xf32>
    tpu.vector_store %arg13[%c8_102, %c0_103], %104 {strides = array<i32>} : memref<72x256xf32, #tpu.memory_space<vmem>>, vector<4x256xf32>,
    %c0_104 = arith.constant 0 : index
    %c127_105 = arith.constant 127 : index
    %106 = vector.load %arg12[%c0_104, %c127_105] : memref<8x512xf32, #tpu.memory_space<vmem>>, vector<8x256xf32>
    %107 = vector.broadcast %4 : vector<1x256xf32> to vector<8x256xf32>
    %108 = arith.mulf %106, %107 : vector<8x256xf32>
    %109 = vector.extract_strided_slice %108 {offsets = [0, 0], sizes = [4, 256], strides = [1, 1]} : vector<8x256xf32> to vector<4x256xf32>
    %c12 = arith.constant 12 : index
    %c0_106 = arith.constant 0 : index
    %110 = vector.load %arg13[%c12, %c0_106] : memref<72x256xf32, #tpu.memory_space<vmem>>, vector<4x256xf32>
    tpu.vector_store %arg13[%c12, %c0_106], %109 {strides = array<i32>} : memref<72x256xf32, #tpu.memory_space<vmem>>, vector<4x256xf32>,
    %c0_107 = arith.constant 0 : index
    %c128_108 = arith.constant 128 : index
    %111 = vector.load %arg12[%c0_107, %c128_108] : memref<8x512xf32, #tpu.memory_space<vmem>>, vector<8x256xf32>
    %112 = vector.extract_strided_slice %111 {offsets = [0, 0], sizes = [4, 256], strides = [1, 1]} : vector<8x256xf32> to vector<4x256xf32>
    %c16_109 = arith.constant 16 : index
    %c0_110 = arith.constant 0 : index
    %113 = vector.load %arg13[%c16_109, %c0_110] : memref<72x256xf32, #tpu.memory_space<vmem>>, vector<4x256xf32>
    tpu.vector_store %arg13[%c16_109, %c0_110], %112 {strides = array<i32>} : memref<72x256xf32, #tpu.memory_space<vmem>>, vector<4x256xf32>,
    %c0_111 = arith.constant 0 : index
    %c129_112 = arith.constant 129 : index
    %114 = vector.load %arg12[%c0_111, %c129_112] : memref<8x512xf32, #tpu.memory_space<vmem>>, vector<8x256xf32>
    %115 = vector.broadcast %5 : vector<1x256xf32> to vector<8x256xf32>
    %116 = arith.mulf %114, %115 : vector<8x256xf32>
    %117 = vector.extract_strided_slice %116 {offsets = [0, 0], sizes = [4, 256], strides = [1, 1]} : vector<8x256xf32> to vector<4x256xf32>
    %c20 = arith.constant 20 : index
    %c0_113 = arith.constant 0 : index
    %118 = vector.load %arg13[%c20, %c0_113] : memref<72x256xf32, #tpu.memory_space<vmem>>, vector<4x256xf32>
    tpu.vector_store %arg13[%c20, %c0_113], %117 {strides = array<i32>} : memref<72x256xf32, #tpu.memory_space<vmem>>, vector<4x256xf32>,
    %c0_114 = arith.constant 0 : index
    %c143_115 = arith.constant 143 : index
    %119 = vector.load %arg12[%c0_114, %c143_115] : memref<8x512xf32, #tpu.memory_space<vmem>>, vector<8x256xf32>
    %120 = vector.broadcast %4 : vector<1x256xf32> to vector<8x256xf32>
    %121 = arith.mulf %119, %120 : vector<8x256xf32>
    %122 = vector.extract_strided_slice %121 {offsets = [0, 0], sizes = [4, 256], strides = [1, 1]} : vector<8x256xf32> to vector<4x256xf32>
    %c24_116 = arith.constant 24 : index
    %c0_117 = arith.constant 0 : index
    %123 = vector.load %arg13[%c24_116, %c0_117] : memref<72x256xf32, #tpu.memory_space<vmem>>, vector<4x256xf32>
    tpu.vector_store %arg13[%c24_116, %c0_117], %122 {strides = array<i32>} : memref<72x256xf32, #tpu.memory_space<vmem>>, vector<4x256xf32>,
    %c0_118 = arith.constant 0 : index
    %c144_119 = arith.constant 144 : index
    %124 = vector.load %arg12[%c0_118, %c144_119] : memref<8x512xf32, #tpu.memory_space<vmem>>, vector<8x256xf32>
    %125 = vector.extract_strided_slice %124 {offsets = [0, 0], sizes = [4, 256], strides = [1, 1]} : vector<8x256xf32> to vector<4x256xf32>
    %c28 = arith.constant 28 : index
    %c0_120 = arith.constant 0 : index
    %126 = vector.load %arg13[%c28, %c0_120] : memref<72x256xf32, #tpu.memory_space<vmem>>, vector<4x256xf32>
    tpu.vector_store %arg13[%c28, %c0_120], %125 {strides = array<i32>} : memref<72x256xf32, #tpu.memory_space<vmem>>, vector<4x256xf32>,
    %c0_121 = arith.constant 0 : index
    %c145_122 = arith.constant 145 : index
    %127 = vector.load %arg12[%c0_121, %c145_122] : memref<8x512xf32, #tpu.memory_space<vmem>>, vector<8x256xf32>
    %128 = vector.broadcast %5 : vector<1x256xf32> to vector<8x256xf32>
    %129 = arith.mulf %127, %128 : vector<8x256xf32>
    %130 = vector.extract_strided_slice %129 {offsets = [0, 0], sizes = [4, 256], strides = [1, 1]} : vector<8x256xf32> to vector<4x256xf32>
    %c32_123 = arith.constant 32 : index
    %c0_124 = arith.constant 0 : index
    %131 = vector.load %arg13[%c32_123, %c0_124] : memref<72x256xf32, #tpu.memory_space<vmem>>, vector<4x256xf32>
    tpu.vector_store %arg13[%c32_123, %c0_124], %130 {strides = array<i32>} : memref<72x256xf32, #tpu.memory_space<vmem>>, vector<4x256xf32>,
    %c0_125 = arith.constant 0 : index
    %c0_126 = arith.constant 0 : index
    %132 = vector.load %arg9[%c0_125, %c0_126] : memref<4x36xf32, #tpu.memory_space<vmem>>, vector<4x36xf32>
    %c0_127 = arith.constant 0 : index
    %c0_128 = arith.constant 0 : index
    %133 = vector.load %arg13[%c0_127, %c0_128] : memref<72x256xf32, #tpu.memory_space<vmem>>, vector<36x256xf32>
    %cst_129 = arith.constant dense<0.000000e+00> : vector<4x256xf32>
    %134 = tpu.matmul %132, %133, %cst_129 {dimension_numbers = #tpu.dot_dimension_numbers<[1], [0], [0], [1], [0, 0, 1, 1], [], []>} : vector<4x36xf32>, vector<36x256xf32>, vector<4x256xf32> -> vector<4x256xf32>
    %c0_130 = arith.constant 0 : index
    %c0_131 = arith.constant 0 : index
    %135 = vector.load %arg10[%c0_130, %c0_131] : memref<4x1xf32, #tpu.memory_space<vmem>>, vector<4x1xf32>
    %136 = vector.broadcast %135 : vector<4x1xf32> to vector<4x256xf32>
    %137 = arith.addf %134, %136 : vector<4x256xf32>
    %cst_132 = arith.constant 0.00999999977 : f32
    %138 = vector.broadcast %cst_132 : f32 to vector<4x256xf32>
    %139 = arith.mulf %138, %137 : vector<4x256xf32>
    %140 = arith.maximumf %137, %139 : vector<4x256xf32>
    %141 = arith.addf %140, %87 : vector<4x256xf32>
    %c0_133 = arith.constant 0 : index
    %c0_134 = arith.constant 0 : index
    %142 = vector.load %arg11[%c0_133, %c0_134] : memref<4x256xf32, #tpu.memory_space<vmem>>, vector<4x256xf32>
    tpu.vector_store %arg11[%c0_133, %c0_134], %141 {strides = array<i32>} : memref<4x256xf32, #tpu.memory_space<vmem>>, vector<4x256xf32>,
    return
  }
  func.func @transform_0(%arg0: i32) -> (i32, i32) {
    %c0_i32 = arith.constant 0 : i32
    %c0_i32_0 = arith.constant 0 : i32
    %c0_i32_1 = arith.constant 0 : i32
    return %c0_i32, %c0_i32_0 : i32, i32
  }
  func.func @transform_1(%arg0: i32) -> (i32, i32) {
    %c0_i32 = arith.constant 0 : i32
    %c0_i32_0 = arith.constant 0 : i32
    %c0_i32_1 = arith.constant 0 : i32
    return %c0_i32, %c0_i32_0 : i32, i32
  }
  func.func @transform_2(%arg0: i32) -> (i32, i32, i32) {
    %c0_i32 = arith.constant 0 : i32
    %c0_i32_0 = arith.constant 0 : i32
    %c0_i32_1 = arith.constant 0 : i32
    return %arg0, %c0_i32, %c0_i32_0 : i32, i32, i32
  }
  func.func @transform_3(%arg0: i32) -> (i32, i32, i32) {
    %c0_i32 = arith.constant 0 : i32
    %c0_i32_0 = arith.constant 0 : i32
    %c0_i32_1 = arith.constant 0 : i32
    return %arg0, %c0_i32, %c0_i32_0 : i32, i32, i32
  }
  func.func @transform_4(%arg0: i32) -> (i32, i32) {
    %c0_i32 = arith.constant 0 : i32
    %c0_i32_0 = arith.constant 0 : i32
    %c0_i32_1 = arith.constant 0 : i32
    return %c0_i32, %c0_i32_0 : i32, i32
  }
  func.func @transform_5(%arg0: i32) -> (i32, i32) {
    %c0_i32 = arith.constant 0 : i32
    %c0_i32_0 = arith.constant 0 : i32
    %c0_i32_1 = arith.constant 0 : i32
    return %c0_i32, %c0_i32_0 : i32, i32
  }
  func.func @transform_6(%arg0: i32) -> (i32, i32) {
    %c0_i32 = arith.constant 0 : i32
    %c0_i32_0 = arith.constant 0 : i32
    %c0_i32_1 = arith.constant 0 : i32
    return %c0_i32, %c0_i32_0 : i32, i32
  }
  func.func @transform_7(%arg0: i32) -> (i32, i32) {
    %c0_i32 = arith.constant 0 : i32
    %c0_i32_0 = arith.constant 0 : i32
    %c0_i32_1 = arith.constant 0 : i32
    return %c0_i32, %c0_i32_0 : i32, i32
  }
  func.func @transform_8(%arg0: i32) -> (i32, i32) {
    %c0_i32 = arith.constant 0 : i32
    %c0_i32_0 = arith.constant 0 : i32
    %c0_i32_1 = arith.constant 0 : i32
    return %c0_i32, %c0_i32_0 : i32, i32
  }
  func.func @transform_9(%arg0: i32) -> (i32, i32) {
    %c0_i32 = arith.constant 0 : i32
    %c0_i32_0 = arith.constant 0 : i32
    %c0_i32_1 = arith.constant 0 : i32
    return %c0_i32, %c0_i32_0 : i32, i32
  }
  func.func @transform_10(%arg0: i32) -> (i32, i32) {
    %c0_i32 = arith.constant 0 : i32
    %c0_i32_0 = arith.constant 0 : i32
    return %c0_i32, %arg0 : i32, i32
  }
}

</mosaic_0001>

<llo_original>
// kernel: decoder_layer_forward.1
$region0: #{decoder_layer_forward.1}
  #allocation0 [shape = 'u32[]', space=smem, size = 0x4, offset = 0x4, fixed_abs, tag = 'smem constant byte address 0x4 - core index']
  #allocation1 [shape = 'u32[144,128]{1,0:T(1,128)}', space=vmem, size = 0x12000, scoped, tag = 'internal scratch']
  #allocation2 [shape = 'f32[8,512]{1,0:T(8,128)}', space=vmem, size = 0x4000, scoped, tag = 'scratch operand']
  #allocation3 [shape = 'f32[72,256]{1,0:T(8,128)}', space=vmem, size = 0x12000, scoped, tag = 'scratch operand']
  %s0 = inlined_call_operand.vmem [shape: f32[2,256], index: 0, kind: input, shape index: {}]
  %s1 = inlined_call_operand.vmem [shape: f32[64,256], index: 1, kind: input, shape index: {}]
  %s2 = inlined_call_operand.vmem [shape: f32[2,8,64], index: 2, kind: input, shape index: {}]
  %s3 = inlined_call_operand.vmem [shape: f32[2,4,256], index: 3, kind: input, shape index: {}]
  %s4 = inlined_call_operand.vmem [shape: f32[4,72], index: 4, kind: input, shape index: {}]
  %s5 = inlined_call_operand.vmem [shape: f32[4,1], index: 5, kind: input, shape index: {}]
  %s6 = inlined_call_operand.vmem [shape: f32[8,72], index: 6, kind: input, shape index: {}]
  %s7 = inlined_call_operand.vmem [shape: f32[8,1], index: 7, kind: input, shape index: {}]
  %s8 = inlined_call_operand.vmem [shape: f32[4,36], index: 8, kind: input, shape index: {}]
  %s9 = inlined_call_operand.vmem [shape: f32[4,1], index: 9, kind: input, shape index: {}]
  %s10 = inlined_call_operand.vmem [shape: f32[4,512], index: 10, kind: output, shape index: {}]
  %s11 = sld [smem:[#allocation0]]
  $region73: #{decoder_layer_forward.1} parent=0
    _
  %s13 = ssub.s32 1, %s11
  %s14 = scalar_select 0, %s13, %s11
  loop: start=0, step=1, limit=4
  $region2: #{decoder_layer_forward.1} parent=0 // loop_pre_header
    _
  $region3: #{decoder_layer_forward.1} parent=0 // loop_header
    %s16 = sphi 0, %s20
    %p17 = scmp.ge.s32.totalorder %s16, 4
    %s24 = sphi 0, %s24
    %s26 = sphi 0, %s24
    %s27 = sphi 0, %s26
    %s41 = sphi 0, %s27
    %s45 = sphi 0, %s45
    %s47 = sphi 0, %s45
    %s48 = sphi 0, %s47
    %s62 = sphi 0, %s48
    %s68 = sphi 0, %s70
    %s71 = sphi 0, %s68
    %s72 = sphi 0, %s71
    %s88 = sphi 0, %s72
    %s94 = sphi 0, %s96
    %s97 = sphi 0, %s94
    %s98 = sphi 0, %s97
    %s114 = sphi 0, %s98
    %s118 = sphi 0, %s118
    %s120 = sphi 0, %s118
    %s121 = sphi 0, %s120
    %s135 = sphi 0, %s121
    %s139 = sphi 0, %s139
    %s141 = sphi 0, %s139
    %s142 = sphi 0, %s141
    %s156 = sphi 0, %s142
    %s160 = sphi 0, %s160
    %s162 = sphi 0, %s160
    %s163 = sphi 0, %s162
    %s177 = sphi 0, %s163
    %s181 = sphi 0, %s181
    %s183 = sphi 0, %s181
    %s184 = sphi 0, %s183
    %s198 = sphi 0, %s184
    %s202 = sphi 0, %s202
    %s204 = sphi 0, %s202
    %s205 = sphi 0, %s204
    %s219 = sphi 0, %s205
    %s223 = sphi 0, %s223
    %s225 = sphi 0, %s223
    %s226 = sphi 0, %s225
    %s240 = sphi 0, %s226
    %s246 = sphi 0, %s248
    %s249 = sphi 0, %s246
    %s250 = sphi 0, %s249
    %s266 = sphi 0, %s250
  $region4: #{decoder_layer_forward.1} parent=0 // loop_header_branch
    %19 = sbr.rel (%p17) target = $region8
  $region5: #{decoder_layer_forward.1} parent=0 // loop_body
    %s21 = ssub.s32 %s16, 1
    %s22 = ssub.s32 %s16, 2
    %s23 = sadd.s32 %s16, 1
    %s25 = sadd.s32 %s24, 1
    %p28 = scmp.eq.s32.totalorder %s16, 1
    %p29 = scmp.ne.s32.totalorder %s24, %s26
    %p30 = scmp.eq.s32.totalorder %s16, 0
    %p31 = por %p29, %p30
    %p32 = scmp.ne.s32.totalorder %s24, %s26
    %p33 = scmp.eq.s32.totalorder %s21, 1
    %p34 = por %p32, %p33
    %p35 = scmp.ne.s32.totalorder %s26, %s27
    %p36 = scmp.eq.s32.totalorder %s21, 0
    %p37 = por %p35, %p36
    %p38 = scmp.ne.s32.totalorder %s26, %s27
    %p39 = scmp.eq.s32.totalorder %s22, 1
    %p40 = por %p38, %p39
    %p42 = scmp.ne.s32.totalorder %s27, %s41
    %p43 = scmp.eq.s32.totalorder %s22, 0
    %p44 = por %p42, %p43
    %s46 = sadd.s32 %s45, 1
    %p49 = scmp.eq.s32.totalorder %s16, 1
    %p50 = scmp.ne.s32.totalorder %s45, %s47
    %p51 = scmp.eq.s32.totalorder %s16, 0
    %p52 = por %p50, %p51
    %p53 = scmp.ne.s32.totalorder %s45, %s47
    %p54 = scmp.eq.s32.totalorder %s21, 1
    %p55 = por %p53, %p54
    %p56 = scmp.ne.s32.totalorder %s47, %s48
    %p57 = scmp.eq.s32.totalorder %s21, 0
    %p58 = por %p56, %p57
    %p59 = scmp.ne.s32.totalorder %s47, %s48
    %p60 = scmp.eq.s32.totalorder %s22, 1
    %p61 = por %p59, %p60
    %p63 = scmp.ne.s32.totalorder %s48, %s62
    %p64 = scmp.eq.s32.totalorder %s22, 0
    %p65 = por %p63, %p64
    %s66 = ssub.s32 %s16, %s23
    %p67 = scmp.eq.s32.totalorder %s66, 0
    %s69 = sadd.s32 %s68, 1
    %s70 = scalar_select %p67, %s68, %s69
    %p73 = pneg %p67
    %p74 = scmp.eq.s32.totalorder %s16, 1
    %p75 = por %p73, %p74
    %p76 = scmp.ne.s32.totalorder %s68, %s71
    %p77 = scmp.eq.s32.totalorder %s16, 0
    %p78 = por %p76, %p77
    %p79 = scmp.ne.s32.totalorder %s68, %s71
    %p80 = scmp.eq.s32.totalorder %s21, 1
    %p81 = por %p79, %p80
    %p82 = scmp.ne.s32.totalorder %s71, %s72
    %p83 = scmp.eq.s32.totalorder %s21, 0
    %p84 = por %p82, %p83
    %p85 = scmp.ne.s32.totalorder %s71, %s72
    %p86 = scmp.eq.s32.totalorder %s22, 1
    %p87 = por %p85, %p86
    %p89 = scmp.ne.s32.totalorder %s72, %s88
    %p90 = scmp.eq.s32.totalorder %s22, 0
    %p91 = por %p89, %p90
    %s92 = ssub.s32 %s16, %s23
    %p93 = scmp.eq.s32.totalorder %s92, 0
    %s95 = sadd.s32 %s94, 1
    %s96 = scalar_select %p93, %s94, %s95
    %p99 = pneg %p93
    %p100 = scmp.eq.s32.totalorder %s16, 1
    %p101 = por %p99, %p100
    %p102 = scmp.ne.s32.totalorder %s94, %s97
    %p103 = scmp.eq.s32.totalorder %s16, 0
    %p104 = por %p102, %p103
    %p105 = scmp.ne.s32.totalorder %s94, %s97
    %p106 = scmp.eq.s32.totalorder %s21, 1
    %p107 = por %p105, %p106
    %p108 = scmp.ne.s32.totalorder %s97, %s98
    %p109 = scmp.eq.s32.totalorder %s21, 0
    %p110 = por %p108, %p109
    %p111 = scmp.ne.s32.totalorder %s97, %s98
    %p112 = scmp.eq.s32.totalorder %s22, 1
    %p113 = por %p111, %p112
    %p115 = scmp.ne.s32.totalorder %s98, %s114
    %p116 = scmp.eq.s32.totalorder %s22, 0
    %p117 = por %p115, %p116
    %s119 = sadd.s32 %s118, 1
    %p122 = scmp.eq.s32.totalorder %s16, 1
    %p123 = scmp.ne.s32.totalorder %s118, %s120
    %p124 = scmp.eq.s32.totalorder %s16, 0
    %p125 = por %p123, %p124
    %p126 = scmp.ne.s32.totalorder %s118, %s120
    %p127 = scmp.eq.s32.totalorder %s21, 1
    %p128 = por %p126, %p127
    %p129 = scmp.ne.s32.totalorder %s120, %s121
    %p130 = scmp.eq.s32.totalorder %s21, 0
    %p131 = por %p129, %p130
    %p132 = scmp.ne.s32.totalorder %s120, %s121
    %p133 = scmp.eq.s32.totalorder %s22, 1
    %p134 = por %p132, %p133
    %p136 = scmp.ne.s32.totalorder %s121, %s135
    %p137 = scmp.eq.s32.totalorder %s22, 0
    %p138 = por %p136, %p137
    %s140 = sadd.s32 %s139, 1
    %p143 = scmp.eq.s32.totalorder %s16, 1
    %p144 = scmp.ne.s32.totalorder %s139, %s141
    %p145 = scmp.eq.s32.totalorder %s16, 0
    %p146 = por %p144, %p145
    %p147 = scmp.ne.s32.totalorder %s139, %s141
    %p148 = scmp.eq.s32.totalorder %s21, 1
    %p149 = por %p147, %p148
    %p150 = scmp.ne.s32.totalorder %s141, %s142
    %p151 = scmp.eq.s32.totalorder %s21, 0
    %p152 = por %p150, %p151
    %p153 = scmp.ne.s32.totalorder %s141, %s142
    %p154 = scmp.eq.s32.totalorder %s22, 1
    %p155 = por %p153, %p154
    %p157 = scmp.ne.s32.totalorder %s142, %s156
    %p158 = scmp.eq.s32.totalorder %s22, 0
    %p159 = por %p157, %p158
    %s161 = sadd.s32 %s160, 1
    %p164 = scmp.eq.s32.totalorder %s16, 1
    %p165 = scmp.ne.s32.totalorder %s160, %s162
    %p166 = scmp.eq.s32.totalorder %s16, 0
    %p167 = por %p165, %p166
    %p168 = scmp.ne.s32.totalorder %s160, %s162
    %p169 = scmp.eq.s32.totalorder %s21, 1
    %p170 = por %p168, %p169
    %p171 = scmp.ne.s32.totalorder %s162, %s163
    %p172 = scmp.eq.s32.totalorder %s21, 0
    %p173 = por %p171, %p172
    %p174 = scmp.ne.s32.totalorder %s162, %s163
    %p175 = scmp.eq.s32.totalorder %s22, 1
    %p176 = por %p174, %p175
    %p178 = scmp.ne.s32.totalorder %s163, %s177
    %p179 = scmp.eq.s32.totalorder %s22, 0
    %p180 = por %p178, %p179
    %s182 = sadd.s32 %s181, 1
    %p185 = scmp.eq.s32.totalorder %s16, 1
    %p186 = scmp.ne.s32.totalorder %s181, %s183
    %p187 = scmp.eq.s32.totalorder %s16, 0
    %p188 = por %p186, %p187
    %p189 = scmp.ne.s32.totalorder %s181, %s183
    %p190 = scmp.eq.s32.totalorder %s21, 1
    %p191 = por %p189, %p190
    %p192 = scmp.ne.s32.totalorder %s183, %s184
    %p193 = scmp.eq.s32.totalorder %s21, 0
    %p194 = por %p192, %p193
    %p195 = scmp.ne.s32.totalorder %s183, %s184
    %p196 = scmp.eq.s32.totalorder %s22, 1
    %p197 = por %p195, %p196
    %p199 = scmp.ne.s32.totalorder %s184, %s198
    %p200 = scmp.eq.s32.totalorder %s22, 0
    %p201 = por %p199, %p200
    %s203 = sadd.s32 %s202, 1
    %p206 = scmp.eq.s32.totalorder %s16, 1
    %p207 = scmp.ne.s32.totalorder %s202, %s204
    %p208 = scmp.eq.s32.totalorder %s16, 0
    %p209 = por %p207, %p208
    %p210 = scmp.ne.s32.totalorder %s202, %s204
    %p211 = scmp.eq.s32.totalorder %s21, 1
    %p212 = por %p210, %p211
    %p213 = scmp.ne.s32.totalorder %s204, %s205
    %p214 = scmp.eq.s32.totalorder %s21, 0
    %p215 = por %p213, %p214
    %p216 = scmp.ne.s32.totalorder %s204, %s205
    %p217 = scmp.eq.s32.totalorder %s22, 1
    %p218 = por %p216, %p217
    %p220 = scmp.ne.s32.totalorder %s205, %s219
    %p221 = scmp.eq.s32.totalorder %s22, 0
    %p222 = por %p220, %p221
    %s224 = sadd.s32 %s223, 1
    %p227 = scmp.eq.s32.totalorder %s16, 1
    %p228 = scmp.ne.s32.totalorder %s223, %s225
    %p229 = scmp.eq.s32.totalorder %s16, 0
    %p230 = por %p228, %p229
    %p231 = scmp.ne.s32.totalorder %s223, %s225
    %p232 = scmp.eq.s32.totalorder %s21, 1
    %p233 = por %p231, %p232
    %p234 = scmp.ne.s32.totalorder %s225, %s226
    %p235 = scmp.eq.s32.totalorder %s21, 0
    %p236 = por %p234, %p235
    %p237 = scmp.ne.s32.totalorder %s225, %s226
    %p238 = scmp.eq.s32.totalorder %s22, 1
    %p239 = por %p237, %p238
    %p241 = scmp.ne.s32.totalorder %s226, %s240
    %p242 = scmp.eq.s32.totalorder %s22, 0
    %p243 = por %p241, %p242
    %s244 = ssub.s32 %s16, %s23
    %p245 = scmp.eq.s32.totalorder %s244, 0
    %s247 = sadd.s32 %s246, 1
    %s248 = scalar_select %p245, %s246, %s247
    %p251 = pneg %p245
    %p252 = scmp.eq.s32.totalorder %s16, 1
    %p253 = por %p251, %p252
    %p254 = scmp.ne.s32.totalorder %s246, %s249
    %p255 = scmp.eq.s32.totalorder %s16, 0
    %p256 = por %p254, %p255
    %p257 = scmp.ne.s32.totalorder %s246, %s249
    %p258 = scmp.eq.s32.totalorder %s21, 1
    %p259 = por %p257, %p258
    %p260 = scmp.ne.s32.totalorder %s249, %s250
    %p261 = scmp.eq.s32.totalorder %s21, 0
    %p262 = por %p260, %p261
    %p263 = scmp.ne.s32.totalorder %s249, %s250
    %p264 = scmp.eq.s32.totalorder %s22, 1
    %p265 = por %p263, %p264
    %p267 = scmp.ne.s32.totalorder %s250, %s266
    %p268 = scmp.eq.s32.totalorder %s22, 0
    %p269 = por %p267, %p268
    %p270 = scmp.le.s32.totalorder 1, %s16
    %p271 = scmp.lt.s32.totalorder %s16, 3
    %p272 = pnand %p270, %p271
    %p273 = pneg %p272
    // Predicated region
    $region9: #{decoder_layer_forward.1} parent=5 // pred_check
      _
    $region10: #{decoder_layer_forward.1} parent=5 // pred_check_branch
      %275 = sbr.rel (%p272) target = $region12
    $region11: #{decoder_layer_forward.1} parent=5 // pred_region
      %s276 = ssub.s32 %s16, 1
      // Predicated region
      $region13: #{decoder_layer_forward.1} parent=11 // pred_check
        %p277 = pneg %p37
      $region14: #{decoder_layer_forward.1} parent=11 // pred_check_branch
        %279 = sbr.rel (%p277) target = $region16
      $region15: #{decoder_layer_forward.1} parent=11 // pred_region
        _
      $region16: #{decoder_layer_forward.1} parent=11 // pred_fallthru
        _
      // Predicated region
      $region17: #{decoder_layer_forward.1} parent=11 // pred_check
        %p280 = pneg %p58
      $region18: #{decoder_layer_forward.1} parent=11 // pred_check_branch
        %282 = sbr.rel (%p280) target = $region20
      $region19: #{decoder_layer_forward.1} parent=11 // pred_region
        _
      $region20: #{decoder_layer_forward.1} parent=11 // pred_fallthru
        _
      // Predicated region
      $region21: #{decoder_layer_forward.1} parent=11 // pred_check
        %p283 = pneg %p131
      $region22: #{decoder_layer_forward.1} parent=11 // pred_check_branch
        %285 = sbr.rel (%p283) target = $region24
      $region23: #{decoder_layer_forward.1} parent=11 // pred_region
        _
      $region24: #{decoder_layer_forward.1} parent=11 // pred_fallthru
        _
      // Predicated region
      $region25: #{decoder_layer_forward.1} parent=11 // pred_check
        %p286 = pneg %p152
      $region26: #{decoder_layer_forward.1} parent=11 // pred_check_branch
        %288 = sbr.rel (%p286) target = $region28
      $region27: #{decoder_layer_forward.1} parent=11 // pred_region
        _
      $region28: #{decoder_layer_forward.1} parent=11 // pred_fallthru
        _
      // Predicated region
      $region29: #{decoder_layer_forward.1} parent=11 // pred_check
        %p289 = pneg %p173
      $region30: #{decoder_layer_forward.1} parent=11 // pred_check_branch
        %291 = sbr.rel (%p289) target = $region32
      $region31: #{decoder_layer_forward.1} parent=11 // pred_region
        _
      $region32: #{decoder_layer_forward.1} parent=11 // pred_fallthru
        _
      // Predicated region
      $region33: #{decoder_layer_forward.1} parent=11 // pred_check
        %p292 = pneg %p194
      $region34: #{decoder_layer_forward.1} parent=11 // pred_check_branch
        %294 = sbr.rel (%p292) target = $region36
      $region35: #{decoder_layer_forward.1} parent=11 // pred_region
        _
      $region36: #{decoder_layer_forward.1} parent=11 // pred_fallthru
        _
      // Predicated region
      $region37: #{decoder_layer_forward.1} parent=11 // pred_check
        %p295 = pneg %p215
      $region38: #{decoder_layer_forward.1} parent=11 // pred_check_branch
        %297 = sbr.rel (%p295) target = $region40
      $region39: #{decoder_layer_forward.1} parent=11 // pred_region
        _
      $region40: #{decoder_layer_forward.1} parent=11 // pred_fallthru
        _
      // Predicated region
      $region41: #{decoder_layer_forward.1} parent=11 // pred_check
        %p298 = pneg %p236
      $region42: #{decoder_layer_forward.1} parent=11 // pred_check_branch
        %300 = sbr.rel (%p298) target = $region44
      $region43: #{decoder_layer_forward.1} parent=11 // pred_region
        _
      $region44: #{decoder_layer_forward.1} parent=11 // pred_fallthru
        _
    $region12: #{decoder_layer_forward.1} parent=5 // pred_fallthru
      _
    %p301 = scmp.lt.s32.totalorder %s16, 2
    // Predicated region
    $region45: #{decoder_layer_forward.1} parent=5 // pred_check
      %p302 = pneg %p301
    $region46: #{decoder_layer_forward.1} parent=5 // pred_check_branch
      %304 = sbr.rel (%p302) target = $region48
    $region47: #{decoder_layer_forward.1} parent=5 // pred_region
      // Predicated region
      $region49: #{decoder_layer_forward.1} parent=47 // pred_check
        %p305 = pneg %p78
      $region50: #{decoder_layer_forward.1} parent=47 // pred_check_branch
        %307 = sbr.rel (%p305) target = $region52
      $region51: #{decoder_layer_forward.1} parent=47 // pred_region
        %p308 = scmp.lt.s32.totalorder %s16, 1
        %s309 = scalar_select %p308, %s16, 1
        %s310 = smul.addr %s309, 8
        %s311 = scalar_lea.vmem %s2, %s310
      $region52: #{decoder_layer_forward.1} parent=47 // pred_fallthru
        _
      // Predicated region
      $region53: #{decoder_layer_forward.1} parent=47 // pred_check
        %p312 = pneg %p104
      $region54: #{decoder_layer_forward.1} parent=47 // pred_check_branch
        %314 = sbr.rel (%p312) target = $region56
      $region55: #{decoder_layer_forward.1} parent=47 // pred_region
        %p315 = scmp.lt.s32.totalorder %s16, 1
        %s316 = scalar_select %p315, %s16, 1
        %s317 = smul.addr %s316, 2
        %s318 = smul.addr %s317, 4
        %s319 = scalar_lea.vmem %s3, %s318
      $region56: #{decoder_layer_forward.1} parent=47 // pred_fallthru
        _
    $region48: #{decoder_layer_forward.1} parent=5 // pred_fallthru
      _
    %p320 = scmp.le.s32.totalorder 1, %s16
    %p321 = scmp.lt.s32.totalorder %s16, 3
    %p322 = pnand %p320, %p321
    %p323 = pneg %p322
    // Predicated region
    $region57: #{decoder_layer_forward.1} parent=5 // pred_check
      _
    $region58: #{decoder_layer_forward.1} parent=5 // pred_check_branch
      %325 = sbr.rel (%p322) target = $region60
    $region59: #{decoder_layer_forward.1} parent=5 // pred_region
      %s326 = ssub.s32 %s16, 1
      %p327 = pneg %p37
      %p328 = pneg %p34
      %p329 = pneg %p58
      %p330 = pneg %p55
      %p331 = scmp.lt.s32.totalorder %s21, 1
      %s332 = scalar_select %p331, %s21, 1
      %s333 = smul.addr %s332, 8
      %s334 = scalar_lea.vmem %s2, %s333
      %p335 = pneg %p84
      %p336 = pneg %p81
      %p337 = scmp.lt.s32.totalorder %s21, 1
      %s338 = scalar_select %p337, %s21, 1
      %s339 = smul.addr %s338, 2
      %s340 = smul.addr %s339, 4
      %s341 = scalar_lea.vmem %s3, %s340
      %p342 = pneg %p110
      %p343 = pneg %p107
      %p344 = pneg %p131
      %p345 = pneg %p128
      %p346 = pneg %p152
      %p347 = pneg %p149
      %p348 = pneg %p173
      %p349 = pneg %p170
      %p350 = pneg %p194
      %p351 = pneg %p191
      %p352 = pneg %p215
      %p353 = pneg %p212
      %p354 = pneg %p236
      %p355 = pneg %p233
      %p356 = pneg %p262
      %p357 = pneg %p259
      %s358 = smul.u32 2, %s21
      %p359 = scmp.lt.s32.totalorder %s358, 3
      %s360 = scalar_select %p359, %s358, 3
      %s361 = smul.addr %s360, 4
      %s362 = scalar_lea.vmem %s10, %s361
      %p363 = scmp.lt.s32.totalorder %s21, 1
      %s364 = scalar_select %p363, %s21, 1
      %s365 = smul.addr %s364, 8
      %s366 = scalar_lea.vmem %s2, %s365
      %p367 = scmp.lt.s32.totalorder %s21, 1
      %s368 = scalar_select %p367, %s21, 1
      %s369 = smul.addr %s368, 2
      %s370 = smul.addr %s369, 4
      %s371 = scalar_lea.vmem %s3, %s370
      %s372 = smul.u32 2, %s21
      %p373 = scmp.lt.s32.totalorder %s372, 3
      %s374 = scalar_select %p373, %s372, 3
      %s375 = smul.addr %s374, 4
      %s376 = scalar_lea.vmem %s10, %s375
      %s377 = smul.u32 2, %s21
      %378 = vst [vmem:[#allocation2] sm:$0xff] 0.0
      %379 = vst [vmem:[#allocation2 + $0x18] sm:$0xff] 0.0
      %v380 = vld [vmem:[%s0] ss:$2 sm:$0x3]
      %s381 = scalar_lea.vmem %s0, 1
      %v382 = vld [vmem:[%s381] ss:$2 sm:$0x3]
      %v383 = vld [vmem:[%s366] sm:$0xff]
      %v384 = vld [vmem:[%s1] sm:$0xff]
      %v385 = vld [vmem:[%s1 + $0x8] sm:$0xff]
      %v386 = vld [vmem:[%s1 + $0x10] sm:$0xff]
      %v387 = vld [vmem:[%s1 + $0x18] sm:$0xff]
      %v388 = vld [vmem:[%s1 + $0x20] sm:$0xff]
      %v389 = vld [vmem:[%s1 + $0x28] sm:$0xff]
      %v390 = vld [vmem:[%s1 + $0x30] sm:$0xff]
      %v391 = vld [vmem:[%s1 + $0x38] sm:$0xff]
      %v392 = vld [vmem:[%s1 + $0x40] sm:$0xff]
      %v393 = vld [vmem:[%s1 + $0x48] sm:$0xff]
      %v394 = vld [vmem:[%s1 + $0x50] sm:$0xff]
      %v395 = vld [vmem:[%s1 + $0x58] sm:$0xff]
      %v396 = vld [vmem:[%s1 + $0x60] sm:$0xff]
      %v397 = vld [vmem:[%s1 + $0x68] sm:$0xff]
      %v398 = vld [vmem:[%s1 + $0x70] sm:$0xff]
      %v399 = vld [vmem:[%s1 + $0x78] sm:$0xff]
      %vm400 = vcmask 523264
      %v402 = vsel %vm400, %v383, 0
      %404 = vmatprep.subr.mxu0 %v385
      %405 = vmatpush1.msra.mxu0 %v384
      %406 = vmatprep.subr.mxu0 %v387
      %407 = vmatpush1.msra.mxu0 %v386
      %408 = vmatprep.subr.mxu0 %v389
      %409 = vmatpush1.msra.mxu0 %v388
      %410 = vmatprep.subr.mxu0 %v391
      %411 = vmatpush1.msra.mxu0 %v390
      %412 = vmatprep.subr.mxu0 %v393
      %413 = vmatpush1.msra.mxu0 %v392
      %414 = vmatprep.subr.mxu0 %v395
      %415 = vmatpush1.msra.mxu0 %v394
      %416 = vmatprep.subr.mxu0 %v397
      %417 = vmatpush1.msra.mxu0 %v396
      %418 = vmatprep.subr.mxu0 %v399
      %419 = vmatpush1.msra.mxu0 %v398
      %420 = vmatprep.subr.mxu0 0.0
      %421 = vmatpush1.msra.mxu0 0.0
      %422 = vmatprep.subr.mxu0 0.0
      %423 = vmatpush1.msra.mxu0 0.0
      %424 = vmatprep.subr.mxu0 0.0
      %425 = vmatpush1.msra.mxu0 0.0
      %426 = vmatprep.subr.mxu0 0.0
      %427 = vmatpush1.msra.mxu0 0.0
      %428 = vmatprep.subr.mxu0 0.0
      %429 = vmatpush1.msra.mxu0 0.0
      %430 = vmatprep.subr.mxu0 0.0
      %431 = vmatpush1.msra.mxu0 0.0
      %432 = vmatprep.subr.mxu0 0.0
      %433 = vmatpush1.msra.mxu0 0.0
      %434 = vmatprep.subr.mxu0 0.0
      %435 = vmatpush1.msra.mxu0 0.0
      %436 = vmatprep.subr.mxu0 0.0
      %437 = vmatpush1.msra.mxu0 0.0
      %438 = vmatprep.subr.mxu0 0.0
      %439 = vmatpush1.msra.mxu0 0.0
      %440 = vmatprep.subr.mxu0 0.0
      %441 = vmatpush1.msra.mxu0 0.0
      %442 = vmatprep.subr.mxu0 0.0
      %443 = vmatpush1.msra.mxu0 0.0
      %444 = vmatprep.subr.mxu0 0.0
      %445 = vmatpush1.msra.mxu0 0.0
      %446 = vmatprep.subr.mxu0 0.0
      %447 = vmatpush1.msra.mxu0 0.0
      %448 = vmatprep.subr.mxu0 0.0
      %449 = vmatpush1.msra.mxu0 0.0
      %450 = vmatprep.subr.mxu0 0.0
      %451 = vmatpush1.msra.mxu0 0.0
      %452 = vmatprep.subr.mxu0 0.0
      %453 = vmatpush1.msra.mxu0 0.0
      %454 = vmatprep.subr.mxu0 0.0
      %455 = vmatpush1.msra.mxu0 0.0
      %456 = vmatprep.subr.mxu0 0.0
      %457 = vmatpush1.msra.mxu0 0.0
      %458 = vmatprep.subr.mxu0 0.0
      %459 = vmatpush1.msra.mxu0 0.0
      %460 = vmatprep.subr.mxu0 0.0
      %461 = vmatpush1.msra.mxu0 0.0
      %462 = vmatprep.subr.mxu0 0.0
      %463 = vmatpush1.msra.mxu0 0.0
      %464 = vmatprep.subr.mxu0 0.0
      %465 = vmatpush1.msra.mxu0 0.0
      %466 = vmatprep.subr.mxu0 0.0
      %467 = vmatpush1.msra.mxu0 0.0
      %468 = vmatprep.mubr.f32.mxu0 0.0
      %469 = vmatmul.mubr.f32.gmra.mrb[0].mxu0 %v402
      %v470 = vpop.f32.mrb[0].mxu0
      %v471 = vadd.f32 0.0, %v470
      %v472 = vpop.f32.mrb[0].mxu0
      %v473 = vadd.f32 0.0, %v472
      %474 = vdwg.mxu0
      %475 = vst [vmem:[#allocation2 + $0x8] sm:$0xff] %v471
      %476 = vst [vmem:[#allocation2 + $0x10] sm:$0xff] %v473
      %v477 = vld [vmem:[#allocation2] sm:$0xff]
      %v478 = vld [vmem:[#allocation2 + $0x8] sm:$0xff]
      %v479 = vld [vmem:[#allocation2 + $0x10] sm:$0xff]
      %v481 = vlaneseq
      %v482 = vshrl.u32 %v481, 7
      %v483 = vsub.s32 0, %v482
      %v484 = vrot.slane %v380, %v483
      %v485 = vlaneseq
      %v486 = vshrl.u32 %v485, 7
      %v487 = vsub.s32 1, %v486
      %v488 = vrot.slane %v380, %v487
      %489 = vrot.lane.b32.xlu0 %v484, 111
      %v490 = vpop.permute.xlu0 %489
      %491 = vrot.lane.b32.xlu0 %v488, 111
      %v492 = vpop.permute.xlu0 %491
      %vm493 = vcmask 908288
      %v494 = vsel %vm493, %v490, %v492
      %v498 = vmul.f32 %v477, %v490
      %v499 = vmul.f32 %v478, %v494
      %v500 = vmul.f32 %v479, %v492
      %504 = vrot.lane.b32.xlu0 %v498, 17
      %v505 = vpop.permute.xlu0 %504
      %506 = vrot.lane.b32.xlu0 %v499, 17
      %v507 = vpop.permute.xlu0 %506
      %508 = vrot.lane.b32.xlu0 %v500, 17
      %v509 = vpop.permute.xlu0 %508
      %vm510 = vcmask 138240
      %v511 = vsel %vm510, %v505, %v507
      %v512 = vsel %vm510, %v507, %v509
      %515 = vst [vmem:[#allocation3] sm:$0xff] %v511
      %516 = vst [vmem:[#allocation3 + $0x8] sm:$0xff] %v512
      %v517 = vld [vmem:[#allocation2] sm:$0xff]
      %v518 = vld [vmem:[#allocation2 + $0x8] sm:$0xff]
      %v519 = vld [vmem:[#allocation2 + $0x10] sm:$0xff]
      %523 = vrot.lane.b32.xlu0 %v517, 16
      %v524 = vpop.permute.xlu0 %523
      %525 = vrot.lane.b32.xlu0 %v518, 16
      %v526 = vpop.permute.xlu0 %525
      %527 = vrot.lane.b32.xlu0 %v519, 16
      %v528 = vpop.permute.xlu0 %527
      %vm529 = vcmask 130048
      %v530 = vsel %vm529, %v524, %v526
      %v531 = vsel %vm529, %v526, %v528
      %534 = vst [vmem:[#allocation3 + $0x10] sm:$0xff] %v530
      %535 = vst [vmem:[#allocation3 + $0x18] sm:$0xff] %v531
      %v536 = vld [vmem:[#allocation2] sm:$0xff]
      %v537 = vld [vmem:[#allocation2 + $0x8] sm:$0xff]
      %v538 = vld [vmem:[#allocation2 + $0x10] sm:$0xff]
      %v540 = vlaneseq
      %v541 = vshrl.u32 %v540, 7
      %v542 = vsub.s32 0, %v541
      %v543 = vrot.slane %v382, %v542
      %v544 = vlaneseq
      %v545 = vshrl.u32 %v544, 7
      %v546 = vsub.s32 1, %v545
      %v547 = vrot.slane %v382, %v546
      %548 = vrot.lane.b32.xlu0 %v543, 113
      %v549 = vpop.permute.xlu0 %548
      %550 = vrot.lane.b32.xlu0 %v547, 113
      %v551 = vpop.permute.xlu0 %550
      %vm552 = vcmask 924672
      %v553 = vsel %vm552, %v549, %v551
      %v557 = vmul.f32 %v536, %v549
      %v558 = vmul.f32 %v537, %v553
      %v559 = vmul.f32 %v538, %v551
      %563 = vrot.lane.b32.xlu0 %v557, 15
      %v564 = vpop.permute.xlu0 %563
      %565 = vrot.lane.b32.xlu0 %v558, 15
      %v566 = vpop.permute.xlu0 %565
      %567 = vrot.lane.b32.xlu0 %v559, 15
      %v568 = vpop.permute.xlu0 %567
      %vm569 = vcmask 121856
      %v570 = vsel %vm569, %v564, %v566
      %v571 = vsel %vm569, %v566, %v568
      %574 = vst [vmem:[#allocation3 + $0x20] sm:$0xff] %v570
      %575 = vst [vmem:[#allocation3 + $0x28] sm:$0xff] %v571
      %v576 = vld [vmem:[#allocation2] sm:$0xff]
      %v577 = vld [vmem:[#allocation2 + $0x8] sm:$0xff]
      %v578 = vld [vmem:[#allocation2 + $0x10] sm:$0xff]
      %579 = vrot.lane.b32.xlu0 %v484, 127
      %v580 = vpop.permute.xlu0 %579
      %581 = vrot.lane.b32.xlu0 %v488, 127
      %v582 = vpop.permute.xlu0 %581
      %vm583 = vcmask 1039360
      %v584 = vsel %vm583, %v580, %v582
      %v588 = vmul.f32 %v576, %v580
      %v589 = vmul.f32 %v577, %v584
      %v590 = vmul.f32 %v578, %v582
      %594 = vrot.lane.b32.xlu0 %v588, 1
      %v595 = vpop.permute.xlu0 %594
      %596 = vrot.lane.b32.xlu0 %v589, 1
      %v597 = vpop.permute.xlu0 %596
      %598 = vrot.lane.b32.xlu0 %v590, 1
      %v599 = vpop.permute.xlu0 %598
      %vm600 = vcmask 7168
      %v601 = vsel %vm600, %v595, %v597
      %v602 = vsel %vm600, %v597, %v599
      %605 = vst [vmem:[#allocation3 + $0x30] sm:$0xff] %v601
      %606 = vst [vmem:[#allocation3 + $0x38] sm:$0xff] %v602
      %v607 = vld [vmem:[#allocation2 + $0x8] sm:$0xff]
      %v608 = vld [vmem:[#allocation2 + $0x10] sm:$0xff]
      %609 = vst [vmem:[#allocation3 + $0x40] sm:$0xff] %v607
      %610 = vst [vmem:[#allocation3 + $0x48] sm:$0xff] %v608
      %v611 = vld [vmem:[#allocation2 + $0x8] sm:$0xff]
      %v612 = vld [vmem:[#allocation2 + $0x10] sm:$0xff]
      %v613 = vld [vmem:[#allocation2 + $0x18] sm:$0xff]
      %614 = vrot.lane.b32.xlu0 %v543, 1
      %v615 = vpop.permute.xlu0 %614
      %616 = vrot.lane.b32.xlu0 %v547, 1
      %v617 = vpop.permute.xlu0 %616
      %v618 = vsel %vm600, %v615, %v617
      %v622 = vmul.f32 %v611, %v615
      %v623 = vmul.f32 %v612, %v618
      %v624 = vmul.f32 %v613, %v617
      %628 = vrot.lane.b32.xlu0 %v622, 127
      %v629 = vpop.permute.xlu0 %628
      %630 = vrot.lane.b32.xlu0 %v623, 127
      %v631 = vpop.permute.xlu0 %630
      %632 = vrot.lane.b32.xlu0 %v624, 127
      %v633 = vpop.permute.xlu0 %632
      %v634 = vsel %vm583, %v629, %v631
      %v635 = vsel %vm583, %v631, %v633
      %638 = vst [vmem:[#allocation3 + $0x50] sm:$0xff] %v634
      %639 = vst [vmem:[#allocation3 + $0x58] sm:$0xff] %v635
      %v640 = vld [vmem:[#allocation2 + $0x8] sm:$0xff]
      %v641 = vld [vmem:[#allocation2 + $0x10] sm:$0xff]
      %v642 = vld [vmem:[#allocation2 + $0x18] sm:$0xff]
      %643 = vrot.lane.b32.xlu0 %v484, 15
      %v644 = vpop.permute.xlu0 %643
      %645 = vrot.lane.b32.xlu0 %v488, 15
      %v646 = vpop.permute.xlu0 %645
      %v647 = vsel %vm569, %v644, %v646
      %v651 = vmul.f32 %v640, %v644
      %v652 = vmul.f32 %v641, %v647
      %v653 = vmul.f32 %v642, %v646
      %657 = vrot.lane.b32.xlu0 %v651, 113
      %v658 = vpop.permute.xlu0 %657
      %659 = vrot.lane.b32.xlu0 %v652, 113
      %v660 = vpop.permute.xlu0 %659
      %661 = vrot.lane.b32.xlu0 %v653, 113
      %v662 = vpop.permute.xlu0 %661
      %v663 = vsel %vm552, %v658, %v660
      %v664 = vsel %vm552, %v660, %v662
      %667 = vst [vmem:[#allocation3 + $0x60] sm:$0xff] %v663
      %668 = vst [vmem:[#allocation3 + $0x68] sm:$0xff] %v664
      %v669 = vld [vmem:[#allocation2 + $0x8] sm:$0xff]
      %v670 = vld [vmem:[#allocation2 + $0x10] sm:$0xff]
      %v671 = vld [vmem:[#allocation2 + $0x18] sm:$0xff]
      %675 = vrot.lane.b32.xlu0 %v669, 112
      %v676 = vpop.permute.xlu0 %675
      %677 = vrot.lane.b32.xlu0 %v670, 112
      %v678 = vpop.permute.xlu0 %677
      %679 = vrot.lane.b32.xlu0 %v671, 112
      %v680 = vpop.permute.xlu0 %679
      %vm681 = vcmask 916480
      %v682 = vsel %vm681, %v676, %v678
      %v683 = vsel %vm681, %v678, %v680
      %686 = vst [vmem:[#allocation3 + $0x70] sm:$0xff] %v682
      %687 = vst [vmem:[#allocation3 + $0x78] sm:$0xff] %v683
      %v688 = vld [vmem:[#allocation2 + $0x8] sm:$0xff]
      %v689 = vld [vmem:[#allocation2 + $0x10] sm:$0xff]
      %v690 = vld [vmem:[#allocation2 + $0x18] sm:$0xff]
      %691 = vrot.lane.b32.xlu0 %v543, 17
      %v692 = vpop.permute.xlu0 %691
      %693 = vrot.lane.b32.xlu0 %v547, 17
      %v694 = vpop.permute.xlu0 %693
      %v695 = vsel %vm510, %v692, %v694
      %v699 = vmul.f32 %v688, %v692
      %v700 = vmul.f32 %v689, %v695
      %v701 = vmul.f32 %v690, %v694
      %705 = vrot.lane.b32.xlu0 %v699, 111
      %v706 = vpop.permute.xlu0 %705
      %707 = vrot.lane.b32.xlu0 %v700, 111
      %v708 = vpop.permute.xlu0 %707
      %709 = vrot.lane.b32.xlu0 %v701, 111
      %v710 = vpop.permute.xlu0 %709
      %v711 = vsel %vm493, %v706, %v708
      %v712 = vsel %vm493, %v708, %v710
      %715 = vst [vmem:[#allocation3 + $0x80] sm:$0xff] %v711
      %716 = vst [vmem:[#allocation3 + $0x88] sm:$0xff] %v712
      %v717 = vld [vmem:[%s4] sm:$0xf]
      %v718 = vld [vmem:[#allocation3] sm:$0xff]
      %v719 = vld [vmem:[#allocation3 + $0x8] sm:$0xff]
      %v720 = vld [vmem:[#allocation3 + $0x10] sm:$0xff]
      %v721 = vld [vmem:[#allocation3 + $0x18] sm:$0xff]
      %v722 = vld [vmem:[#allocation3 + $0x20] sm:$0xff]
      %v723 = vld [vmem:[#allocation3 + $0x28] sm:$0xff]
      %v724 = vld [vmem:[#allocation3 + $0x30] sm:$0xff]
      %v725 = vld [vmem:[#allocation3 + $0x38] sm:$0xff]
      %v726 = vld [vmem:[#allocation3 + $0x40] sm:$0xff]
      %v727 = vld [vmem:[#allocation3 + $0x48] sm:$0xff]
      %v728 = vld [vmem:[#allocation3 + $0x50] sm:$0xff]
      %v729 = vld [vmem:[#allocation3 + $0x58] sm:$0xff]
      %v730 = vld [vmem:[#allocation3 + $0x60] sm:$0xff]
      %v731 = vld [vmem:[#allocation3 + $0x68] sm:$0xff]
      %v732 = vld [vmem:[#allocation3 + $0x70] sm:$0xff]
      %v733 = vld [vmem:[#allocation3 + $0x78] sm:$0xff]
      %v734 = vld [vmem:[#allocation3 + $0x80] sm:$0xff]
      %v735 = vld [vmem:[#allocation3 + $0x88] sm:$0xff]
      %v736 = vld [vmem:[%s5] sm:$0xf]
      %738 = vset.pattern.permute.xlu0 0
      %739 = vperm.xlu0 %738, %v736
      %v740 = vpop.permute.xlu0 %739
      %vm742 = vcmask 588800
      %v744 = vsel %vm742, %v717, 0
      %746 = vmatprep.subr.mxu0 %v719
      %747 = vmatpush1.msra.mxu0 %v718
      %748 = vmatprep.subr.mxu0 %v721
      %749 = vmatpush1.msra.mxu0 %v720
      %750 = vmatprep.subr.mxu0 %v723
      %751 = vmatpush1.msra.mxu0 %v722
      %752 = vmatprep.subr.mxu0 %v725
      %753 = vmatpush1.msra.mxu0 %v724
      %754 = vmatprep.subr.mxu0 %v727
      %755 = vmatpush1.msra.mxu0 %v726
      %756 = vmatprep.subr.mxu0 %v729
      %757 = vmatpush1.msra.mxu0 %v728
      %758 = vmatprep.subr.mxu0 %v731
      %759 = vmatpush1.msra.mxu0 %v730
      %760 = vmatprep.subr.mxu0 %v733
      %761 = vmatpush1.msra.mxu0 %v732
      %762 = vmatprep.subr.mxu0 %v735
      %763 = vmatpush1.msra.mxu0 %v734
      %764 = vmatprep.subr.mxu0 0.0
      %765 = vmatpush1.msra.mxu0 0.0
      %766 = vmatprep.subr.mxu0 0.0
      %767 = vmatpush1.msra.mxu0 0.0
      %768 = vmatprep.subr.mxu0 0.0
      %769 = vmatpush1.msra.mxu0 0.0
      %770 = vmatprep.subr.mxu0 0.0
      %771 = vmatpush1.msra.mxu0 0.0
      %772 = vmatprep.subr.mxu0 0.0
      %773 = vmatpush1.msra.mxu0 0.0
      %774 = vmatprep.subr.mxu0 0.0
      %775 = vmatpush1.msra.mxu0 0.0
      %776 = vmatprep.subr.mxu0 0.0
      %777 = vmatpush1.msra.mxu0 0.0
      %778 = vmatprep.subr.mxu0 0.0
      %779 = vmatpush1.msra.mxu0 0.0
      %780 = vmatprep.subr.mxu0 0.0
      %781 = vmatpush1.msra.mxu0 0.0
      %782 = vmatprep.subr.mxu0 0.0
      %783 = vmatpush1.msra.mxu0 0.0
      %784 = vmatprep.subr.mxu0 0.0
      %785 = vmatpush1.msra.mxu0 0.0
      %786 = vmatprep.subr.mxu0 0.0
      %787 = vmatpush1.msra.mxu0 0.0
      %788 = vmatprep.subr.mxu0 0.0
      %789 = vmatpush1.msra.mxu0 0.0
      %790 = vmatprep.subr.mxu0 0.0
      %791 = vmatpush1.msra.mxu0 0.0
      %792 = vmatprep.subr.mxu0 0.0
      %793 = vmatpush1.msra.mxu0 0.0
      %794 = vmatprep.subr.mxu0 0.0
      %795 = vmatpush1.msra.mxu0 0.0
      %796 = vmatprep.subr.mxu0 0.0
      %797 = vmatpush1.msra.mxu0 0.0
      %798 = vmatprep.subr.mxu0 0.0
      %799 = vmatpush1.msra.mxu0 0.0
      %800 = vmatprep.subr.mxu0 0.0
      %801 = vmatpush1.msra.mxu0 0.0
      %802 = vmatprep.subr.mxu0 0.0
      %803 = vmatpush1.msra.mxu0 0.0
      %804 = vmatprep.subr.mxu0 0.0
      %805 = vmatpush1.msra.mxu0 0.0
      %806 = vmatprep.subr.mxu0 0.0
      %807 = vmatpush1.msra.mxu0 0.0
      %808 = vmatprep.subr.mxu0 0.0
      %809 = vmatpush1.msra.mxu0 0.0
      %810 = vmatprep.mubr.f32.mxu0 0.0
      %811 = vmatmul.mubr.f32.gmra.mrb[0].mxu0 %v744
      %v812 = vpop.f32.mrb[0].mxu0
      %v813 = vadd.f32 %v740, %v812
      %v814 = vpop.f32.mrb[0].mxu0
      %v815 = vadd.f32 %v740, %v814
      %816 = vdwg.mxu0
      %817 = vst [vmem:[#allocation2 + $0x8] sm:$0xf] %v813
      %818 = vst [vmem:[#allocation2 + $0x10] sm:$0xf] %v815
      %v819 = vld [vmem:[%s371] sm:$0xff]
      %v821 = vcombine.low %v819, %v819
      %823 = vst [vmem:[#allocation2 + $0x8] sm:$0xf0] %v821
      %824 = vst [vmem:[#allocation2 + $0x10] sm:$0xf0] %v819
      %v825 = vld [vmem:[#allocation2] sm:$0xff]
      %v826 = vld [vmem:[#allocation2 + $0x8] sm:$0xff]
      %v827 = vld [vmem:[#allocation2 + $0x10] sm:$0xff]
      %v828 = vmul.f32 %v825, %v490
      %v829 = vmul.f32 %v826, %v494
      %v830 = vmul.f32 %v827, %v492
      %834 = vrot.lane.b32.xlu0 %v828, 17
      %v835 = vpop.permute.xlu0 %834
      %836 = vrot.lane.b32.xlu0 %v829, 17
      %v837 = vpop.permute.xlu0 %836
      %838 = vrot.lane.b32.xlu0 %v830, 17
      %v839 = vpop.permute.xlu0 %838
      %v840 = vsel %vm510, %v835, %v837
      %v841 = vsel %vm510, %v837, %v839
      %844 = vst [vmem:[#allocation3] sm:$0xff] %v840
      %845 = vst [vmem:[#allocation3 + $0x8] sm:$0xff] %v841
      %v846 = vld [vmem:[#allocation2] sm:$0xff]
      %v847 = vld [vmem:[#allocation2 + $0x8] sm:$0xff]
      %v848 = vld [vmem:[#allocation2 + $0x10] sm:$0xff]
      %852 = vrot.lane.b32.xlu0 %v846, 16
      %v853 = vpop.permute.xlu0 %852
      %854 = vrot.lane.b32.xlu0 %v847, 16
      %v855 = vpop.permute.xlu0 %854
      %856 = vrot.lane.b32.xlu0 %v848, 16
      %v857 = vpop.permute.xlu0 %856
      %v858 = vsel %vm529, %v853, %v855
      %v859 = vsel %vm529, %v855, %v857
      %862 = vst [vmem:[#allocation3 + $0x10] sm:$0xff] %v858
      %863 = vst [vmem:[#allocation3 + $0x18] sm:$0xff] %v859
      %v864 = vld [vmem:[#allocation2] sm:$0xff]
      %v865 = vld [vmem:[#allocation2 + $0x8] sm:$0xff]
      %v866 = vld [vmem:[#allocation2 + $0x10] sm:$0xff]
      %v867 = vmul.f32 %v864, %v549
      %v868 = vmul.f32 %v865, %v553
      %v869 = vmul.f32 %v866, %v551
      %873 = vrot.lane.b32.xlu0 %v867, 15
      %v874 = vpop.permute.xlu0 %873
      %875 = vrot.lane.b32.xlu0 %v868, 15
      %v876 = vpop.permute.xlu0 %875
      %877 = vrot.lane.b32.xlu0 %v869, 15
      %v878 = vpop.permute.xlu0 %877
      %v879 = vsel %vm569, %v874, %v876
      %v880 = vsel %vm569, %v876, %v878
      %883 = vst [vmem:[#allocation3 + $0x20] sm:$0xff] %v879
      %884 = vst [vmem:[#allocation3 + $0x28] sm:$0xff] %v880
      %v885 = vld [vmem:[#allocation2] sm:$0xff]
      %v886 = vld [vmem:[#allocation2 + $0x8] sm:$0xff]
      %v887 = vld [vmem:[#allocation2 + $0x10] sm:$0xff]
      %v888 = vmul.f32 %v885, %v580
      %v889 = vmul.f32 %v886, %v584
      %v890 = vmul.f32 %v887, %v582
      %894 = vrot.lane.b32.xlu0 %v888, 1
      %v895 = vpop.permute.xlu0 %894
      %896 = vrot.lane.b32.xlu0 %v889, 1
      %v897 = vpop.permute.xlu0 %896
      %898 = vrot.lane.b32.xlu0 %v890, 1
      %v899 = vpop.permute.xlu0 %898
      %v900 = vsel %vm600, %v895, %v897
      %v901 = vsel %vm600, %v897, %v899
      %904 = vst [vmem:[#allocation3 + $0x30] sm:$0xff] %v900
      %905 = vst [vmem:[#allocation3 + $0x38] sm:$0xff] %v901
      %v906 = vld [vmem:[#allocation2 + $0x8] sm:$0xff]
      %v907 = vld [vmem:[#allocation2 + $0x10] sm:$0xff]
      %908 = vst [vmem:[#allocation3 + $0x40] sm:$0xff] %v906
      %909 = vst [vmem:[#allocation3 + $0x48] sm:$0xff] %v907
      %v910 = vld [vmem:[#allocation2 + $0x8] sm:$0xff]
      %v911 = vld [vmem:[#allocation2 + $0x10] sm:$0xff]
      %v912 = vld [vmem:[#allocation2 + $0x18] sm:$0xff]
      %v913 = vmul.f32 %v910, %v615
      %v914 = vmul.f32 %v911, %v618
      %v915 = vmul.f32 %v912, %v617
      %919 = vrot.lane.b32.xlu0 %v913, 127
      %v920 = vpop.permute.xlu0 %919
      %921 = vrot.lane.b32.xlu0 %v914, 127
      %v922 = vpop.permute.xlu0 %921
      %923 = vrot.lane.b32.xlu0 %v915, 127
      %v924 = vpop.permute.xlu0 %923
      %v925 = vsel %vm583, %v920, %v922
      %v926 = vsel %vm583, %v922, %v924
      %929 = vst [vmem:[#allocation3 + $0x50] sm:$0xff] %v925
      %930 = vst [vmem:[#allocation3 + $0x58] sm:$0xff] %v926
      %v931 = vld [vmem:[#allocation2 + $0x8] sm:$0xff]
      %v932 = vld [vmem:[#allocation2 + $0x10] sm:$0xff]
      %v933 = vld [vmem:[#allocation2 + $0x18] sm:$0xff]
      %v934 = vmul.f32 %v931, %v644
      %v935 = vmul.f32 %v932, %v647
      %v936 = vmul.f32 %v933, %v646
      %940 = vrot.lane.b32.xlu0 %v934, 113
      %v941 = vpop.permute.xlu0 %940
      %942 = vrot.lane.b32.xlu0 %v935, 113
      %v943 = vpop.permute.xlu0 %942
      %944 = vrot.lane.b32.xlu0 %v936, 113
      %v945 = vpop.permute.xlu0 %944
      %v946 = vsel %vm552, %v941, %v943
      %v947 = vsel %vm552, %v943, %v945
      %950 = vst [vmem:[#allocation3 + $0x60] sm:$0xff] %v946
      %951 = vst [vmem:[#allocation3 + $0x68] sm:$0xff] %v947
      %v952 = vld [vmem:[#allocation2 + $0x8] sm:$0xff]
      %v953 = vld [vmem:[#allocation2 + $0x10] sm:$0xff]
      %v954 = vld [vmem:[#allocation2 + $0x18] sm:$0xff]
      %958 = vrot.lane.b32.xlu0 %v952, 112
      %v959 = vpop.permute.xlu0 %958
      %960 = vrot.lane.b32.xlu0 %v953, 112
      %v961 = vpop.permute.xlu0 %960
      %962 = vrot.lane.b32.xlu0 %v954, 112
      %v963 = vpop.permute.xlu0 %962
      %v964 = vsel %vm681, %v959, %v961
      %v965 = vsel %vm681, %v961, %v963
      %968 = vst [vmem:[#allocation3 + $0x70] sm:$0xff] %v964
      %969 = vst [vmem:[#allocation3 + $0x78] sm:$0xff] %v965
      %v970 = vld [vmem:[#allocation2 + $0x8] sm:$0xff]
      %v971 = vld [vmem:[#allocation2 + $0x10] sm:$0xff]
      %v972 = vld [vmem:[#allocation2 + $0x18] sm:$0xff]
      %v973 = vmul.f32 %v970, %v692
      %v974 = vmul.f32 %v971, %v695
      %v975 = vmul.f32 %v972, %v694
      %979 = vrot.lane.b32.xlu0 %v973, 111
      %v980 = vpop.permute.xlu0 %979
      %981 = vrot.lane.b32.xlu0 %v974, 111
      %v982 = vpop.permute.xlu0 %981
      %983 = vrot.lane.b32.xlu0 %v975, 111
      %v984 = vpop.permute.xlu0 %983
      %v985 = vsel %vm493, %v980, %v982
      %v986 = vsel %vm493, %v982, %v984
      %989 = vst [vmem:[#allocation3 + $0x80] sm:$0xff] %v985
      %990 = vst [vmem:[#allocation3 + $0x88] sm:$0xff] %v986
      %v991 = vld [vmem:[%s6] sm:$0xff]
      %v992 = vld [vmem:[#allocation3] sm:$0xff]
      %v993 = vld [vmem:[#allocation3 + $0x8] sm:$0xff]
      %v994 = vld [vmem:[#allocation3 + $0x10] sm:$0xff]
      %v995 = vld [vmem:[#allocation3 + $0x18] sm:$0xff]
      %v996 = vld [vmem:[#allocation3 + $0x20] sm:$0xff]
      %v997 = vld [vmem:[#allocation3 + $0x28] sm:$0xff]
      %v998 = vld [vmem:[#allocation3 + $0x30] sm:$0xff]
      %v999 = vld [vmem:[#allocation3 + $0x38] sm:$0xff]
      %v1000 = vld [vmem:[#allocation3 + $0x40] sm:$0xff]
      %v1001 = vld [vmem:[#allocation3 + $0x48] sm:$0xff]
      %v1002 = vld [vmem:[#allocation3 + $0x50] sm:$0xff]
      %v1003 = vld [vmem:[#allocation3 + $0x58] sm:$0xff]
      %v1004 = vld [vmem:[#allocation3 + $0x60] sm:$0xff]
      %v1005 = vld [vmem:[#allocation3 + $0x68] sm:$0xff]
      %v1006 = vld [vmem:[#allocation3 + $0x70] sm:$0xff]
      %v1007 = vld [vmem:[#allocation3 + $0x78] sm:$0xff]
      %v1008 = vld [vmem:[#allocation3 + $0x80] sm:$0xff]
      %v1009 = vld [vmem:[#allocation3 + $0x88] sm:$0xff]
      %v1010 = vld [vmem:[%s7] sm:$0xff]
      %1012 = vset.pattern.permute.xlu0 0
      %1013 = vperm.xlu0 %1012, %v1010
      %v1014 = vpop.permute.xlu0 %1013
      %v1017 = vsel %vm742, %v991, 0
      %1019 = vmatprep.subr.mxu0 %v993
      %1020 = vmatpush1.msra.mxu0 %v992
      %1021 = vmatprep.subr.mxu0 %v995
      %1022 = vmatpush1.msra.mxu0 %v994
      %1023 = vmatprep.subr.mxu0 %v997
      %1024 = vmatpush1.msra.mxu0 %v996
      %1025 = vmatprep.subr.mxu0 %v999
      %1026 = vmatpush1.msra.mxu0 %v998
      %1027 = vmatprep.subr.mxu0 %v1001
      %1028 = vmatpush1.msra.mxu0 %v1000
      %1029 = vmatprep.subr.mxu0 %v1003
      %1030 = vmatpush1.msra.mxu0 %v1002
      %1031 = vmatprep.subr.mxu0 %v1005
      %1032 = vmatpush1.msra.mxu0 %v1004
      %1033 = vmatprep.subr.mxu0 %v1007
      %1034 = vmatpush1.msra.mxu0 %v1006
      %1035 = vmatprep.subr.mxu0 %v1009
      %1036 = vmatpush1.msra.mxu0 %v1008
      %1037 = vmatprep.subr.mxu0 0.0
      %1038 = vmatpush1.msra.mxu0 0.0
      %1039 = vmatprep.subr.mxu0 0.0
      %1040 = vmatpush1.msra.mxu0 0.0
      %1041 = vmatprep.subr.mxu0 0.0
      %1042 = vmatpush1.msra.mxu0 0.0
      %1043 = vmatprep.subr.mxu0 0.0
      %1044 = vmatpush1.msra.mxu0 0.0
      %1045 = vmatprep.subr.mxu0 0.0
      %1046 = vmatpush1.msra.mxu0 0.0
      %1047 = vmatprep.subr.mxu0 0.0
      %1048 = vmatpush1.msra.mxu0 0.0
      %1049 = vmatprep.subr.mxu0 0.0
      %1050 = vmatpush1.msra.mxu0 0.0
      %1051 = vmatprep.subr.mxu0 0.0
      %1052 = vmatpush1.msra.mxu0 0.0
      %1053 = vmatprep.subr.mxu0 0.0
      %1054 = vmatpush1.msra.mxu0 0.0
      %1055 = vmatprep.subr.mxu0 0.0
      %1056 = vmatpush1.msra.mxu0 0.0
      %1057 = vmatprep.subr.mxu0 0.0
      %1058 = vmatpush1.msra.mxu0 0.0
      %1059 = vmatprep.subr.mxu0 0.0
      %1060 = vmatpush1.msra.mxu0 0.0
      %1061 = vmatprep.subr.mxu0 0.0
      %1062 = vmatpush1.msra.mxu0 0.0
      %1063 = vmatprep.subr.mxu0 0.0
      %1064 = vmatpush1.msra.mxu0 0.0
      %1065 = vmatprep.subr.mxu0 0.0
      %1066 = vmatpush1.msra.mxu0 0.0
      %1067 = vmatprep.subr.mxu0 0.0
      %1068 = vmatpush1.msra.mxu0 0.0
      %1069 = vmatprep.subr.mxu0 0.0
      %1070 = vmatpush1.msra.mxu0 0.0
      %1071 = vmatprep.subr.mxu0 0.0
      %1072 = vmatpush1.msra.mxu0 0.0
      %1073 = vmatprep.subr.mxu0 0.0
      %1074 = vmatpush1.msra.mxu0 0.0
      %1075 = vmatprep.subr.mxu0 0.0
      %1076 = vmatpush1.msra.mxu0 0.0
      %1077 = vmatprep.subr.mxu0 0.0
      %1078 = vmatpush1.msra.mxu0 0.0
      %1079 = vmatprep.subr.mxu0 0.0
      %1080 = vmatpush1.msra.mxu0 0.0
      %1081 = vmatprep.subr.mxu0 0.0
      %1082 = vmatpush1.msra.mxu0 0.0
      %1083 = vmatprep.mubr.f32.mxu0 0.0
      %1084 = vmatmul.mubr.f32.gmra.mrb[0].mxu0 %v1017
      %v1085 = vpop.f32.mrb[0].mxu0
      %v1086 = vadd.f32 %v1014, %v1085
      %v1087 = vpop.f32.mrb[0].mxu0
      %v1088 = vadd.f32 %v1014, %v1087
      %1089 = vdwg.mxu0
      %v1090 = vmul.f32 %v1086, 0.01
      %v1091 = vmul.f32 %v1088, 0.01
      %v1092 = vmax.f32 %v1086, %v1090
      %v1093 = vmax.f32 %v1088, %v1091
      %1094 = vst [vmem:[#allocation2 + $0x8] sm:$0xf] %v1092
      %1095 = vst [vmem:[#allocation2 + $0x10] sm:$0xf] %v1093
      %v1096 = vld [vmem:[#allocation2] sm:$0xff]
      %v1097 = vld [vmem:[#allocation2 + $0x8] sm:$0xff]
      %v1098 = vld [vmem:[#allocation2 + $0x10] sm:$0xff]
      %v1099 = vmul.f32 %v1096, %v490
      %v1100 = vmul.f32 %v1097, %v494
      %v1101 = vmul.f32 %v1098, %v492
      %1105 = vrot.lane.b32.xlu0 %v1099, 17
      %v1106 = vpop.permute.xlu0 %1105
      %1107 = vrot.lane.b32.xlu0 %v1100, 17
      %v1108 = vpop.permute.xlu0 %1107
      %1109 = vrot.lane.b32.xlu0 %v1101, 17
      %v1110 = vpop.permute.xlu0 %1109
      %v1111 = vsel %vm510, %v1106, %v1108
      %v1112 = vsel %vm510, %v1108, %v1110
      %1115 = vst [vmem:[#allocation3] sm:$0xf] %v1111
      %1116 = vst [vmem:[#allocation3 + $0x8] sm:$0xf] %v1112
      %v1117 = vld [vmem:[#allocation2] sm:$0xff]
      %v1118 = vld [vmem:[#allocation2 + $0x8] sm:$0xff]
      %v1119 = vld [vmem:[#allocation2 + $0x10] sm:$0xff]
      %v1123 = vrot.slane %v1117, 4
      %v1124 = vrot.slane %v1118, 4
      %v1125 = vrot.slane %v1119, 4
      %1126 = vrot.lane.b32.xlu0 %v1123, 16
      %v1127 = vpop.permute.xlu0 %1126
      %1128 = vrot.lane.b32.xlu0 %v1124, 16
      %v1129 = vpop.permute.xlu0 %1128
      %1130 = vrot.lane.b32.xlu0 %v1125, 16
      %v1131 = vpop.permute.xlu0 %1130
      %v1132 = vsel %vm529, %v1127, %v1129
      %v1133 = vsel %vm529, %v1129, %v1131
      %1136 = vst [vmem:[#allocation3] sm:$0xf0] %v1132
      %1137 = vst [vmem:[#allocation3 + $0x8] sm:$0xf0] %v1133
      %v1138 = vld [vmem:[#allocation2] sm:$0xff]
      %v1139 = vld [vmem:[#allocation2 + $0x8] sm:$0xff]
      %v1140 = vld [vmem:[#allocation2 + $0x10] sm:$0xff]
      %v1141 = vmul.f32 %v1138, %v549
      %v1142 = vmul.f32 %v1139, %v553
      %v1143 = vmul.f32 %v1140, %v551
      %1147 = vrot.lane.b32.xlu0 %v1141, 15
      %v1148 = vpop.permute.xlu0 %1147
      %1149 = vrot.lane.b32.xlu0 %v1142, 15
      %v1150 = vpop.permute.xlu0 %1149
      %1151 = vrot.lane.b32.xlu0 %v1143, 15
      %v1152 = vpop.permute.xlu0 %1151
      %v1153 = vsel %vm569, %v1148, %v1150
      %v1154 = vsel %vm569, %v1150, %v1152
      %1157 = vst [vmem:[#allocation3 + $0x10] sm:$0xf] %v1153
      %1158 = vst [vmem:[#allocation3 + $0x18] sm:$0xf] %v1154
      %v1159 = vld [vmem:[#allocation2] sm:$0xff]
      %v1160 = vld [vmem:[#allocation2 + $0x8] sm:$0xff]
      %v1161 = vld [vmem:[#allocation2 + $0x10] sm:$0xff]
      %v1162 = vmul.f32 %v1159, %v580
      %v1163 = vmul.f32 %v1160, %v584
      %v1164 = vmul.f32 %v1161, %v582
      %v1168 = vrot.slane %v1162, 4
      %v1169 = vrot.slane %v1163, 4
      %v1170 = vrot.slane %v1164, 4
      %1171 = vrot.lane.b32.xlu0 %v1168, 1
      %v1172 = vpop.permute.xlu0 %1171
      %1173 = vrot.lane.b32.xlu0 %v1169, 1
      %v1174 = vpop.permute.xlu0 %1173
      %1175 = vrot.lane.b32.xlu0 %v1170, 1
      %v1176 = vpop.permute.xlu0 %1175
      %v1177 = vsel %vm600, %v1172, %v1174
      %v1178 = vsel %vm600, %v1174, %v1176
      %1181 = vst [vmem:[#allocation3 + $0x10] sm:$0xf0] %v1177
      %1182 = vst [vmem:[#allocation3 + $0x18] sm:$0xf0] %v1178
      %v1183 = vld [vmem:[#allocation2 + $0x8] sm:$0xff]
      %v1184 = vld [vmem:[#allocation2 + $0x10] sm:$0xff]
      %1185 = vst [vmem:[#allocation3 + $0x20] sm:$0xf] %v1183
      %1186 = vst [vmem:[#allocation3 + $0x28] sm:$0xf] %v1184
      %v1187 = vld [vmem:[#allocation2 + $0x8] sm:$0xff]
      %v1188 = vld [vmem:[#allocation2 + $0x10] sm:$0xff]
      %v1189 = vld [vmem:[#allocation2 + $0x18] sm:$0xff]
      %v1190 = vmul.f32 %v1187, %v615
      %v1191 = vmul.f32 %v1188, %v618
      %v1192 = vmul.f32 %v1189, %v617
      %v1196 = vrot.slane %v1190, 4
      %v1197 = vrot.slane %v1191, 4
      %v1198 = vrot.slane %v1192, 4
      %1199 = vrot.lane.b32.xlu0 %v1196, 127
      %v1200 = vpop.permute.xlu0 %1199
      %1201 = vrot.lane.b32.xlu0 %v1197, 127
      %v1202 = vpop.permute.xlu0 %1201
      %1203 = vrot.lane.b32.xlu0 %v1198, 127
      %v1204 = vpop.permute.xlu0 %1203
      %v1205 = vsel %vm583, %v1200, %v1202
      %v1206 = vsel %vm583, %v1202, %v1204
      %1209 = vst [vmem:[#allocation3 + $0x20] sm:$0xf0] %v1205
      %1210 = vst [vmem:[#allocation3 + $0x28] sm:$0xf0] %v1206
      %v1211 = vld [vmem:[#allocation2 + $0x8] sm:$0xff]
      %v1212 = vld [vmem:[#allocation2 + $0x10] sm:$0xff]
      %v1213 = vld [vmem:[#allocation2 + $0x18] sm:$0xff]
      %v1214 = vmul.f32 %v1211, %v644
      %v1215 = vmul.f32 %v1212, %v647
      %v1216 = vmul.f32 %v1213, %v646
      %1220 = vrot.lane.b32.xlu0 %v1214, 113
      %v1221 = vpop.permute.xlu0 %1220
      %1222 = vrot.lane.b32.xlu0 %v1215, 113
      %v1223 = vpop.permute.xlu0 %1222
      %1224 = vrot.lane.b32.xlu0 %v1216, 113
      %v1225 = vpop.permute.xlu0 %1224
      %v1226 = vsel %vm552, %v1221, %v1223
      %v1227 = vsel %vm552, %v1223, %v1225
      %1230 = vst [vmem:[#allocation3 + $0x30] sm:$0xf] %v1226
      %1231 = vst [vmem:[#allocation3 + $0x38] sm:$0xf] %v1227
      %v1232 = vld [vmem:[#allocation2 + $0x8] sm:$0xff]
      %v1233 = vld [vmem:[#allocation2 + $0x10] sm:$0xff]
      %v1234 = vld [vmem:[#allocation2 + $0x18] sm:$0xff]
      %v1238 = vrot.slane %v1232, 4
      %v1239 = vrot.slane %v1233, 4
      %v1240 = vrot.slane %v1234, 4
      %1241 = vrot.lane.b32.xlu0 %v1238, 112
      %v1242 = vpop.permute.xlu0 %1241
      %1243 = vrot.lane.b32.xlu0 %v1239, 112
      %v1244 = vpop.permute.xlu0 %1243
      %1245 = vrot.lane.b32.xlu0 %v1240, 112
      %v1246 = vpop.permute.xlu0 %1245
      %v1247 = vsel %vm681, %v1242, %v1244
      %v1248 = vsel %vm681, %v1244, %v1246
      %1251 = vst [vmem:[#allocation3 + $0x30] sm:$0xf0] %v1247
      %1252 = vst [vmem:[#allocation3 + $0x38] sm:$0xf0] %v1248
      %v1253 = vld [vmem:[#allocation2 + $0x8] sm:$0xff]
      %v1254 = vld [vmem:[#allocation2 + $0x10] sm:$0xff]
      %v1255 = vld [vmem:[#allocation2 + $0x18] sm:$0xff]
      %v1256 = vmul.f32 %v1253, %v692
      %v1257 = vmul.f32 %v1254, %v695
      %v1258 = vmul.f32 %v1255, %v694
      %1262 = vrot.lane.b32.xlu0 %v1256, 111
      %v1263 = vpop.permute.xlu0 %1262
      %1264 = vrot.lane.b32.xlu0 %v1257, 111
      %v1265 = vpop.permute.xlu0 %1264
      %1266 = vrot.lane.b32.xlu0 %v1258, 111
      %v1267 = vpop.permute.xlu0 %1266
      %v1268 = vsel %vm493, %v1263, %v1265
      %v1269 = vsel %vm493, %v1265, %v1267
      %1272 = vst [vmem:[#allocation3 + $0x40] sm:$0xf] %v1268
      %1273 = vst [vmem:[#allocation3 + $0x48] sm:$0xf] %v1269
      %v1274 = vld [vmem:[%s8] sm:$0xf]
      %v1275 = vld [vmem:[#allocation3] sm:$0xff]
      %v1276 = vld [vmem:[#allocation3 + $0x8] sm:$0xff]
      %v1277 = vld [vmem:[#allocation3 + $0x10] sm:$0xff]
      %v1278 = vld [vmem:[#allocation3 + $0x18] sm:$0xff]
      %v1279 = vld [vmem:[#allocation3 + $0x20] sm:$0xff]
      %v1280 = vld [vmem:[#allocation3 + $0x28] sm:$0xff]
      %v1281 = vld [vmem:[#allocation3 + $0x30] sm:$0xff]
      %v1282 = vld [vmem:[#allocation3 + $0x38] sm:$0xff]
      %v1283 = vld [vmem:[#allocation3 + $0x40] sm:$0xf]
      %v1284 = vld [vmem:[#allocation3 + $0x48] sm:$0xf]
      %v1285 = vld [vmem:[%s9] sm:$0xf]
      %1287 = vset.pattern.permute.xlu0 0
      %1288 = vperm.xlu0 %1287, %v1285
      %v1289 = vpop.permute.xlu0 %1288
      %vm1291 = vcmask 293888
      %v1293 = vsel %vm1291, %v1274, 0
      %vm1295 = vcmask 1043456
      %v1297 = vsel %vm1295, %v1283, 0
      %v1300 = vsel %vm1295, %v1284, 0
      %1302 = vmatprep.subr.mxu0 %v1276
      %1303 = vmatpush1.msra.mxu0 %v1275
      %1304 = vmatprep.subr.mxu0 %v1278
      %1305 = vmatpush1.msra.mxu0 %v1277
      %1306 = vmatprep.subr.mxu0 %v1280
      %1307 = vmatpush1.msra.mxu0 %v1279
      %1308 = vmatprep.subr.mxu0 %v1282
      %1309 = vmatpush1.msra.mxu0 %v1281
      %1310 = vmatprep.subr.mxu0 %v1300
      %1311 = vmatpush1.msra.mxu0 %v1297
      %1312 = vmatprep.subr.mxu0 0.0
      %1313 = vmatpush1.msra.mxu0 0.0
      %1314 = vmatprep.subr.mxu0 0.0
      %1315 = vmatpush1.msra.mxu0 0.0
      %1316 = vmatprep.subr.mxu0 0.0
      %1317 = vmatpush1.msra.mxu0 0.0
      %1318 = vmatprep.subr.mxu0 0.0
      %1319 = vmatpush1.msra.mxu0 0.0
      %1320 = vmatprep.subr.mxu0 0.0
      %1321 = vmatpush1.msra.mxu0 0.0
      %1322 = vmatprep.subr.mxu0 0.0
      %1323 = vmatpush1.msra.mxu0 0.0
      %1324 = vmatprep.subr.mxu0 0.0
      %1325 = vmatpush1.msra.mxu0 0.0
      %1326 = vmatprep.subr.mxu0 0.0
      %1327 = vmatpush1.msra.mxu0 0.0
      %1328 = vmatprep.subr.mxu0 0.0
      %1329 = vmatpush1.msra.mxu0 0.0
      %1330 = vmatprep.subr.mxu0 0.0
      %1331 = vmatpush1.msra.mxu0 0.0
      %1332 = vmatprep.subr.mxu0 0.0
      %1333 = vmatpush1.msra.mxu0 0.0
      %1334 = vmatprep.subr.mxu0 0.0
      %1335 = vmatpush1.msra.mxu0 0.0
      %1336 = vmatprep.subr.mxu0 0.0
      %1337 = vmatpush1.msra.mxu0 0.0
      %1338 = vmatprep.subr.mxu0 0.0
      %1339 = vmatpush1.msra.mxu0 0.0
      %1340 = vmatprep.subr.mxu0 0.0
      %1341 = vmatpush1.msra.mxu0 0.0
      %1342 = vmatprep.subr.mxu0 0.0
      %1343 = vmatpush1.msra.mxu0 0.0
      %1344 = vmatprep.subr.mxu0 0.0
      %1345 = vmatpush1.msra.mxu0 0.0
      %1346 = vmatprep.subr.mxu0 0.0
      %1347 = vmatpush1.msra.mxu0 0.0
      %1348 = vmatprep.subr.mxu0 0.0
      %1349 = vmatpush1.msra.mxu0 0.0
      %1350 = vmatprep.subr.mxu0 0.0
      %1351 = vmatpush1.msra.mxu0 0.0
      %1352 = vmatprep.subr.mxu0 0.0
      %1353 = vmatpush1.msra.mxu0 0.0
      %1354 = vmatprep.subr.mxu0 0.0
      %1355 = vmatpush1.msra.mxu0 0.0
      %1356 = vmatprep.subr.mxu0 0.0
      %1357 = vmatpush1.msra.mxu0 0.0
      %1358 = vmatprep.subr.mxu0 0.0
      %1359 = vmatpush1.msra.mxu0 0.0
      %1360 = vmatprep.subr.mxu0 0.0
      %1361 = vmatpush1.msra.mxu0 0.0
      %1362 = vmatprep.subr.mxu0 0.0
      %1363 = vmatpush1.msra.mxu0 0.0
      %1364 = vmatprep.subr.mxu0 0.0
      %1365 = vmatpush1.msra.mxu0 0.0
      %1366 = vmatprep.mubr.f32.mxu0 0.0
      %1367 = vmatmul.mubr.f32.gmra.mrb[0].mxu0 %v1293
      %v1368 = vpop.f32.mrb[0].mxu0
      %v1369 = vadd.f32 %v1289, %v1368
      %v1370 = vpop.f32.mrb[0].mxu0
      %v1371 = vadd.f32 %v1289, %v1370
      %1372 = vdwg.mxu0
      %v1373 = vmul.f32 %v1369, 0.01
      %v1374 = vmul.f32 %v1371, 0.01
      %v1375 = vmax.f32 %v1369, %v1373
      %v1376 = vmax.f32 %v1371, %v1374
      %v1379 = vrot.slane %v1086, 4
      %v1380 = vrot.slane %v1088, 4
      %v1383 = vadd.f32 %v1375, %v1379
      %v1384 = vadd.f32 %v1376, %v1380
      %v1387 = vcombine.low %v1383, %v1384
      %1389 = vst [vmem:[%s376] sm:$0xff] %v1387
      %s1390 = smul.u32 2, %s21
      %p1391 = scmp.lt.s32.totalorder %s1390, 3
      %s1392 = scalar_select %p1391, %s1390, 3
      %s1393 = smul.addr %s1392, 4
      %s1394 = scalar_lea.vmem %s10, %s1393
      // Predicated region
      $region61: #{decoder_layer_forward.1} parent=59 // pred_check
        %p1395 = pneg %p259
      $region62: #{decoder_layer_forward.1} parent=59 // pred_check_branch
        %1397 = sbr.rel (%p1395) target = $region64
      $region63: #{decoder_layer_forward.1} parent=59 // pred_region
        %s1398 = smul.u32 2, %s21
      $region64: #{decoder_layer_forward.1} parent=59 // pred_fallthru
        _
    $region60: #{decoder_layer_forward.1} parent=5 // pred_fallthru
      _
    %p1399 = scmp.le.s32.totalorder 2, %s16
    // Predicated region
    $region65: #{decoder_layer_forward.1} parent=5 // pred_check
      %p1400 = pneg %p1399
    $region66: #{decoder_layer_forward.1} parent=5 // pred_check_branch
      %1402 = sbr.rel (%p1400) target = $region68
    $region67: #{decoder_layer_forward.1} parent=5 // pred_region
      %s1403 = ssub.s32 %s16, 2
      // Predicated region
      $region69: #{decoder_layer_forward.1} parent=67 // pred_check
        %p1404 = pneg %p265
      $region70: #{decoder_layer_forward.1} parent=67 // pred_check_branch
        %1406 = sbr.rel (%p1404) target = $region72
      $region71: #{decoder_layer_forward.1} parent=67 // pred_region
        %s1407 = smul.u32 2, %s22
        %p1408 = scmp.lt.s32.totalorder %s1407, 3
        %s1409 = scalar_select %p1408, %s1407, 3
        %s1410 = smul.addr %s1409, 4
        %s1411 = scalar_lea.vmem %s10, %s1410
      $region72: #{decoder_layer_forward.1} parent=67 // pred_fallthru
        _
    $region68: #{decoder_layer_forward.1} parent=5 // pred_fallthru
      _
  $region6: #{decoder_layer_forward.1} parent=0 // loop_footer
    %s20 = sadd.s32 1, %s16
  $region7: #{decoder_layer_forward.1} parent=0 // loop_footer_branch
    %15 = sbr.rel target = $region3
  $region8: #{decoder_layer_forward.1} parent=0 // loop_exit
    _

</llo_original>
